<compile_context>
chip_gen: v6e
topology: v6e:2x2x1
jax: 0.10.0
libtpu: 0.0.40
codegen_flags: <defaults>
</compile_context>

<pallas_src>
import functools

import jax
import jax.numpy as jnp
from jax.experimental import pallas as pl
from jax.experimental.pallas import tpu as pltpu

EPS = 1e-5                      # PyTorch nn.LayerNorm default
_INV_SQRT2 = 0.7071067811865476
MM_DTYPE = jnp.bfloat16         # MXU operand dtype; accumulation is f32


# ------------------------------ shared math --------------------------------


def _layernorm(v, w, b):
    mu = jnp.mean(v, axis=-1, keepdims=True)
    var = jnp.mean((v - mu) ** 2, axis=-1, keepdims=True)
    return (v - mu) * jax.lax.rsqrt(var + EPS) * w + b


def _gelu_exact(x):
    # nn.GELU default = exact erf-based GELU.
    return 0.5 * x * (1.0 + jax.lax.erf(x * jnp.float32(_INV_SQRT2)))


def _mm(a, w):
    # bf16 MXU operands, f32 accumulation.
    return jnp.dot(a.astype(MM_DTYPE), w.astype(MM_DTYPE),
                   preferred_element_type=jnp.float32)


# -------------------------------- kernel -----------------------------------


def decoder_kernel(num_heads,
                   x_ref, pos_ref, vecs_ref, qkv_w_ref, proj_w_ref,
                   fc1_w_ref, fc2_w_ref, fnorm_ref,
                   out_ref,
                   acc_ref, attn_ref):
    """One (batch_block, layer) grid step.

    x_ref/pos_ref: (Bblk, N, C); out_ref: (Bblk, r_out, C).
    vecs_ref: (1, 8, W) packed per-layer vectors
        rows: 0 ln1_w, 1 ln1_b, 2 ln2_w, 3 ln2_b, 4 proj_b, 5 fc2_b, 6 fc1_b.
    acc_ref (f32 VMEM scratch) carries the activation across the depth axis;
    attn_ref (bf16 VMEM scratch) collects the per-head attention outputs.
    """
    d = pl.program_id(1)
    n_layers = pl.num_programs(1)

    Bblk, N, C = x_ref.shape
    BN = Bblk * N
    hidden = fc1_w_ref.shape[2]
    hd = C // num_heads
    r_out = out_ref.shape[1]

    # Load the input tokens into the resident accumulator on the first layer.
    @pl.when(d == 0)
    def _():
        acc_ref[...] = x_ref[...].astype(jnp.float32).reshape(BN, C)

    # Packed per-layer vectors (one DMA per layer instead of seven).
    vecs = vecs_ref[0]                        # (8, W) f32
    ln1_w, ln1_b = vecs[0:1, :C], vecs[1:2, :C]
    ln2_w, ln2_b = vecs[2:3, :C], vecs[3:4, :C]
    proj_b = vecs[4:5, :C]
    fc2_b = vecs[5:6, :C]
    fc1_b = vecs[6:7, :hidden]

    pos = pos_ref[...].astype(jnp.float32).reshape(BN, C)
    x = acc_ref[...] + pos                    # x = x + pos (per layer)

    # --- attention branch: attn(norm1(x)) ---
    n1 = _layernorm(x, ln1_w, ln1_b)          # (BN, C) f32
    # 1/sqrt(hd) already folded into the Q columns of qkv_w on the host.
    qkv = _mm(n1, qkv_w_ref[0])               # (BN, 3C), f32 accumulation

    for h in range(num_heads):                # static unroll over heads
        q = qkv[:, h * hd:(h + 1) * hd].reshape(Bblk, N, hd)
        k = qkv[:, C + h * hd:C + (h + 1) * hd].reshape(Bblk, N, hd)
        v = qkv[:, 2 * C + h * hd:2 * C + (h + 1) * hd].reshape(Bblk, N, hd)
        s = jnp.einsum("bqd,bkd->bqk", q.astype(MM_DTYPE), k.astype(MM_DTYPE),
                       preferred_element_type=jnp.float32)   # (Bblk, N, N)
        s = s - jnp.max(s, axis=-1, keepdims=True)
        p = jnp.exp(s)
        p = p / jnp.sum(p, axis=-1, keepdims=True)            # exact softmax
        o = jnp.einsum("bqk,bkd->bqd", p.astype(MM_DTYPE), v.astype(MM_DTYPE),
                       preferred_element_type=jnp.float32)    # (Bblk, N, hd)
        # write head output straight into the bf16 VMEM scratch
        attn_ref[:, h * hd:(h + 1) * hd] = o.reshape(BN, hd).astype(MM_DTYPE)

    attn = _mm(attn_ref[...], proj_w_ref[0]) + proj_b          # (BN, C)
    x = x + attn                                               # DropPath = id

    # --- MLP branch: mlp(norm2(x)) ---
    n2 = _layernorm(x, ln2_w, ln2_b)
    hid = _gelu_exact(_mm(n2, fc1_w_ref[0]) + fc1_b)
    mlp = _mm(hid, fc2_w_ref[0]) + fc2_b
    x = x + mlp

    acc_ref[...] = x                                           # carry to next layer

    # Final LayerNorm fused into the last depth step; only the last r_out
    # tokens are normalized and written back to HBM.
    @pl.when(d == n_layers - 1)
    def _():
        fn_w = fnorm_ref[0:1, :]
        fn_b = fnorm_ref[1:2, :]
        xr = x.reshape(Bblk, N, C)
        y = _layernorm(xr[:, N - r_out:, :], fn_w, fn_b)
        out_ref[...] = y.astype(out_ref.dtype)


# ------------------------------- wrapper ------------------------------------


def _choose_batch_block(B, N, target_rows=256):
    """Pick the batch-block size: fold batch into the matmul M dimension
    (toward ~256 rows for the 256-wide v6e/v7x MXU) while keeping >=2
    parallel grid blocks whenever B allows it (2-TC megacore / v7x)."""
    cap = max(1, target_rows // max(N, 1))
    divisors = [d for d in range(1, B + 1) if B % d == 0 and d <= cap]
    if not divisors:
        divisors = [1]
    two_plus = [d for d in divisors if B // d >= 2]
    return max(two_plus) if two_plus else max(divisors)


def transformer_decoder_forward(x, pos, blocks, norm, num_heads,
                                return_token_num=-1, vmem_limit_bytes=None):
    B, N, C = x.shape
    depth = len(blocks)
    hidden = blocks[0]["fc1_w"].shape[1]
    hd = C // num_heads
    r_out = N if return_token_num == -1 else int(return_token_num)

    Bblk = _choose_batch_block(B, N)
    n_bblocks = B // Bblk

    # ---- host-side weight preparation ----
    # Fold 1/sqrt(hd) into the Q columns of qkv_w (f32, then bf16 cast).
    scale_vec = jnp.concatenate([jnp.full((C,), hd ** -0.5, jnp.float32),
                                 jnp.ones((2 * C,), jnp.float32)])

    qkv_w = jnp.stack([blk["qkv_w"] * scale_vec for blk in blocks]).astype(MM_DTYPE)
    proj_w = jnp.stack([blk["proj_w"] for blk in blocks]).astype(MM_DTYPE)
    fc1_w = jnp.stack([blk["fc1_w"] for blk in blocks]).astype(MM_DTYPE)
    fc2_w = jnp.stack([blk["fc2_w"] for blk in blocks]).astype(MM_DTYPE)

    # Pack the seven small per-layer vectors into one (depth, 8, W) array.
    W = max(C, hidden)

    def _pad(v):                               # v: (1, L) -> (1, W)
        return jnp.pad(v.astype(jnp.float32), ((0, 0), (0, W - v.shape[-1])))

    vecs = jnp.stack([
        jnp.concatenate([_pad(blk["ln1_w"]), _pad(blk["ln1_b"]),
                         _pad(blk["ln2_w"]), _pad(blk["ln2_b"]),
                         _pad(blk["proj_b"]), _pad(blk["fc2_b"]),
                         _pad(blk["fc1_b"]), jnp.zeros((1, W), jnp.float32)],
                        axis=0)
        for blk in blocks], axis=0)            # (depth, 8, W)

    fnorm = jnp.concatenate([norm["w"], norm["b"]], axis=0).astype(jnp.float32)  # (2, C)

    def batch_map(g, d):   # tokens / output: depend only on the batch block
        return (g, 0, 0)

    def layer_map(g, d):   # per-layer weights: depend only on the depth step
        return (d, 0, 0)

    in_specs = [
        pl.BlockSpec((Bblk, N, C), batch_map),                 # x
        pl.BlockSpec((Bblk, N, C), batch_map),                 # pos
        pl.BlockSpec((1, 8, W), layer_map),                    # packed per-layer vectors
        pl.BlockSpec((1, C, 3 * C), layer_map),                # qkv w (qkv_bias=False)
        pl.BlockSpec((1, C, C), layer_map),                    # proj w
        pl.BlockSpec((1, C, hidden), layer_map),               # fc1 w
        pl.BlockSpec((1, hidden, C), layer_map),               # fc2 w
        pl.BlockSpec((2, C), lambda g, d: (0, 0)),             # final norm (w; b)
    ]

    # ---- VMEM budget (always passed; v5e default scoped VMEM is 16 MiB) ----
    if vmem_limit_bytes is None:
        per_layer_w = 2 * (C * 3 * C + C * C + 2 * C * hidden)     # bf16
        vec_b = 4 * 8 * W
        io_b = 2 * 4 * Bblk * N * C                                 # x + pos blocks
        out_b = x.dtype.itemsize * Bblk * r_out * C
        scratch_b = (4 + 2) * Bblk * N * C
        temp_b = 4 * Bblk * N * (3 * C + hidden) + 4 * Bblk * num_heads * N * N
        needed = 2 * (per_layer_w + vec_b + io_b + out_b) + scratch_b + temp_b
        vmem_limit_bytes = int(min(128 * 2 ** 20, max(2 * needed, 32 * 2 ** 20)))

    # Advisory cost estimate for XLA's scheduler.
    flops = depth * (2 * B * N * (3 * C * C + C * C + 2 * C * hidden)
                     + 4 * B * num_heads * N * N * hd)
    transcendentals = depth * (B * num_heads * N * N + B * N * hidden)
    weight_bytes = sum(int(a.size) * a.dtype.itemsize
                       for a in (vecs, qkv_w, proj_w, fc1_w, fc2_w, fnorm))
    bytes_accessed = (int(x.size) * x.dtype.itemsize
                      + int(pos.size) * pos.dtype.itemsize
                      + B * r_out * C * x.dtype.itemsize
                      + n_bblocks * weight_bytes)

    out = pl.pallas_call(
        functools.partial(decoder_kernel, num_heads),
        out_shape=jax.ShapeDtypeStruct((B, r_out, C), x.dtype),
        grid_spec=pltpu.PrefetchScalarGridSpec(
            num_scalar_prefetch=0,
            grid=(n_bblocks, depth),               # depth is the inner axis
            in_specs=in_specs,
            out_specs=pl.BlockSpec((Bblk, r_out, C), batch_map),
            scratch_shapes=[
                pltpu.VMEM((Bblk * N, C), jnp.float32),   # resident activation
                pltpu.VMEM((Bblk * N, C), MM_DTYPE),      # per-head attn buffer (bf16)
            ]),
        compiler_params=pltpu.CompilerParams(
            dimension_semantics=("parallel", "arbitrary"),
            vmem_limit_bytes=vmem_limit_bytes),
        cost_estimate=pl.CostEstimate(flops=int(flops),
                                      transcendentals=int(transcendentals),
                                      bytes_accessed=int(bytes_accessed)),
    )(x, pos, vecs, qkv_w, proj_w, fc1_w, fc2_w, fnorm)

    return out


# ----------------------------- parameter init ------------------------------


def xavier_uniform(key, shape):
    fan_in, fan_out = shape
    limit = (6.0 / (fan_in + fan_out)) ** 0.5
    return jax.random.uniform(key, shape, jnp.float32, -limit, limit)


def init_params(key, embed_dim, depth, mlp_ratio):
    hidden = int(embed_dim * mlp_ratio)
    blocks = []
    for i in range(depth):
        k = jax.random.split(jax.random.fold_in(key, i), 4)
        blocks.append({
            "ln1_w": jnp.ones((1, embed_dim), jnp.float32),
            "ln1_b": jnp.zeros((1, embed_dim), jnp.float32),
            "qkv_w": xavier_uniform(k[0], (embed_dim, 3 * embed_dim)),  # qkv_bias=False
            "proj_w": xavier_uniform(k[1], (embed_dim, embed_dim)),
            "proj_b": jnp.zeros((1, embed_dim), jnp.float32),
            "ln2_w": jnp.ones((1, embed_dim), jnp.float32),
            "ln2_b": jnp.zeros((1, embed_dim), jnp.float32),
            "fc1_w": xavier_uniform(k[2], (embed_dim, hidden)),
            "fc1_b": jnp.zeros((1, hidden), jnp.float32),
            "fc2_w": xavier_uniform(k[3], (hidden, embed_dim)),
            "fc2_b": jnp.zeros((1, embed_dim), jnp.float32),
        })
    norm = {"w": jnp.ones((1, embed_dim), jnp.float32),
            "b": jnp.zeros((1, embed_dim), jnp.float32)}
    return blocks, norm


# ----------------------------- pure-JAX reference ---------------------------
# Uses the SAME bf16-operand / f32-accumulation matmuls and the SAME host-side
# scale folding as the kernel, so the comparison validates the Pallas plumbing
# (not the bf16 rounding).


def ref_forward(x, pos, blocks, norm, num_heads):
    B, N, C = x.shape
    hd = C // num_heads
    scale_vec = jnp.concatenate([jnp.full((C,), hd ** -0.5, jnp.float32),
                                 jnp.ones((2 * C,), jnp.float32)])
    for p in blocks:
        h = x + pos
        n1 = _layernorm(h, p["ln1_w"], p["ln1_b"])
        qkv = _mm(n1, p["qkv_w"] * scale_vec)                          # (B, N, 3C)
        q = qkv[..., :C].reshape(B, N, num_heads, hd).transpose(0, 2, 1, 3)
        k = qkv[..., C:2 * C].reshape(B, N, num_heads, hd).transpose(0, 2, 1, 3)
        v = qkv[..., 2 * C:].reshape(B, N, num_heads, hd).transpose(0, 2, 1, 3)
        s = jnp.einsum("bhqd,bhkd->bhqk", q.astype(MM_DTYPE), k.astype(MM_DTYPE),
                       preferred_element_type=jnp.float32)
        a = jax.nn.softmax(s, axis=-1)
        o = jnp.einsum("bhqk,bhkd->bhqd", a.astype(MM_DTYPE), v.astype(MM_DTYPE),
                       preferred_element_type=jnp.float32)
        o = o.transpose(0, 2, 1, 3).reshape(B, N, C)
        o = _mm(o, p["proj_w"]) + p["proj_b"]
        h = h + o
        n2 = _layernorm(h, p["ln2_w"], p["ln2_b"])
        m = _mm(_gelu_exact(_mm(n2, p["fc1_w"]) + p["fc1_b"]),
                p["fc2_w"]) + p["fc2_b"]
        x = h + m
    return _layernorm(x, norm["w"], norm["b"])


# ---------------------------------- main ------------------------------------

if __name__ == "__main__":
    # Small shapes consistent with the module: embed_dim divisible by num_heads.
    B, N = 2, 8
    embed_dim, depth, num_heads, mlp_ratio = 48, 2, 6, 4.0

    key = jax.random.PRNGKey(0)
    kx, kp, kw = jax.random.split(key, 3)
    x = jax.random.normal(kx, (B, N, embed_dim), jnp.float32)
    pos = jax.random.normal(kp, (B, N, embed_dim), jnp.float32)

    blocks, norm = init_params(kw, embed_dim, depth, mlp_ratio)

    out = transformer_decoder_forward(x, pos, blocks, norm, num_heads,
                                      return_token_num=-1)
    out = jax.block_until_ready(out)

    ref = jax.block_until_ready(ref_forward(x, pos, blocks, norm, num_heads))
    assert out.shape == (B, N, embed_dim)
    max_err = float(jnp.max(jnp.abs(out - ref)))
    assert max_err < 2e-3, f"mismatch: {max_err}"

    print("KERNEL_OK")
</pallas_src>

<mosaic_0001>
module attributes {stable_mosaic.version = 11 : i64} {
  func.func @decoder_kernel(%arg0: i32, %arg1: i32, %arg2: memref<1x8x48xf32, #tpu.memory_space<vmem>>, %arg3: memref<1x8x48xf32, #tpu.memory_space<vmem>>, %arg4: memref<1x8x192xf32, #tpu.memory_space<vmem>>, %arg5: memref<1x48x144xbf16, #tpu.memory_space<vmem>>, %arg6: memref<1x48x48xbf16, #tpu.memory_space<vmem>>, %arg7: memref<1x48x192xbf16, #tpu.memory_space<vmem>>, %arg8: memref<1x192x48xbf16, #tpu.memory_space<vmem>>, %arg9: memref<2x48xf32, #tpu.memory_space<vmem>>, %arg10: memref<1x8x48xf32, #tpu.memory_space<vmem>>, %arg11: memref<8x48xf32, #tpu.memory_space<vmem>>, %arg12: memref<8x48xbf16, #tpu.memory_space<vmem>>) attributes {dimension_semantics = [#tpu.dimension_semantics<parallel>, #tpu.dimension_semantics<arbitrary>], iteration_bounds = array<i64: 2, 2>, scalar_prefetch = 0 : i64, scratch_operands = 2 : i64, tpu.core_type = #tpu.core_type<tc>, window_params = [{transform_indices = @transform_0, window_bounds = array<i64: 1, 8, 48>}, {transform_indices = @transform_1, window_bounds = array<i64: 1, 8, 48>}, {transform_indices = @transform_2, window_bounds = array<i64: 1, 8, 192>}, {transform_indices = @transform_3, window_bounds = array<i64: 1, 48, 144>}, {transform_indices = @transform_4, window_bounds = array<i64: 1, 48, 48>}, {transform_indices = @transform_5, window_bounds = array<i64: 1, 48, 192>}, {transform_indices = @transform_6, window_bounds = array<i64: 1, 192, 48>}, {pipeline_mode = #tpu.pipeline_mode<synchronous>, transform_indices = @transform_7, window_bounds = array<i64: 2, 48>}, {transform_indices = @transform_8, window_bounds = array<i64: 1, 8, 48>}]} {
    %c0_i32 = arith.constant 0 : i32
    %0 = arith.cmpi eq, %arg1, %c0_i32 : i32
    %1 = arith.extui %0 : i1 to i32
    %c0_i32_0 = arith.constant 0 : i32
    %2 = arith.cmpi ne, %1, %c0_i32_0 : i32
    scf.if %2 {
      %c0_72 = arith.constant 0 : index
      %c0_73 = arith.constant 0 : index
      %c0_74 = arith.constant 0 : index
      %240 = vector.load %arg2[%c0_72, %c0_73, %c0_74] : memref<1x8x48xf32, #tpu.memory_space<vmem>>, vector<1x8x48xf32>
      %241 = vector.shape_cast %240 : vector<1x8x48xf32> to vector<8x48xf32>
      %c0_75 = arith.constant 0 : index
      %c0_76 = arith.constant 0 : index
      %242 = vector.load %arg11[%c0_75, %c0_76] : memref<8x48xf32, #tpu.memory_space<vmem>>, vector<8x48xf32>
      tpu.vector_store %arg11[%c0_75, %c0_76], %241 {strides = array<i32>} : memref<8x48xf32, #tpu.memory_space<vmem>>, vector<8x48xf32>,
    } else {
    }
    %c0 = arith.constant 0 : index
    %c0_1 = arith.constant 0 : index
    %c0_2 = arith.constant 0 : index
    %3 = vector.load %arg4[%c0, %c0_1, %c0_2] : memref<1x8x192xf32, #tpu.memory_space<vmem>>, vector<1x8x192xf32>
    %4 = vector.shape_cast %3 : vector<1x8x192xf32> to vector<8x192xf32>
    %5 = vector.extract_strided_slice %4 {offsets = [0, 0], sizes = [1, 48], strides = [1, 1]} : vector<8x192xf32> to vector<1x48xf32>
    %6 = vector.extract_strided_slice %4 {offsets = [1, 0], sizes = [1, 48], strides = [1, 1]} : vector<8x192xf32> to vector<1x48xf32>
    %7 = vector.extract_strided_slice %4 {offsets = [2, 0], sizes = [1, 48], strides = [1, 1]} : vector<8x192xf32> to vector<1x48xf32>
    %8 = vector.extract_strided_slice %4 {offsets = [3, 0], sizes = [1, 48], strides = [1, 1]} : vector<8x192xf32> to vector<1x48xf32>
    %9 = vector.extract_strided_slice %4 {offsets = [4, 0], sizes = [1, 48], strides = [1, 1]} : vector<8x192xf32> to vector<1x48xf32>
    %10 = vector.extract_strided_slice %4 {offsets = [5, 0], sizes = [1, 48], strides = [1, 1]} : vector<8x192xf32> to vector<1x48xf32>
    %11 = vector.extract_strided_slice %4 {offsets = [6, 0], sizes = [1, 192], strides = [1, 1]} : vector<8x192xf32> to vector<1x192xf32>
    %c0_3 = arith.constant 0 : index
    %c0_4 = arith.constant 0 : index
    %c0_5 = arith.constant 0 : index
    %12 = vector.load %arg3[%c0_3, %c0_4, %c0_5] : memref<1x8x48xf32, #tpu.memory_space<vmem>>, vector<1x8x48xf32>
    %13 = vector.shape_cast %12 : vector<1x8x48xf32> to vector<8x48xf32>
    %c0_6 = arith.constant 0 : index
    %c0_7 = arith.constant 0 : index
    %14 = vector.load %arg11[%c0_6, %c0_7] : memref<8x48xf32, #tpu.memory_space<vmem>>, vector<8x48xf32>
    %15 = arith.addf %14, %13 : vector<8x48xf32>
    %cst = arith.constant dense<0.000000e+00> : vector<8xf32>
    %16 = vector.multi_reduction <add>, %15, %cst [1] : vector<8x48xf32> to vector<8xf32>
    %17 = vector.shape_cast %16 : vector<8xf32> to vector<8x1xf32>
    %cst_8 = arith.constant 4.800000e+01 : f32
    %18 = vector.broadcast %cst_8 : f32 to vector<8x1xf32>
    %19 = arith.divf %17, %18 : vector<8x1xf32>
    %20 = vector.broadcast %19 : vector<8x1xf32> to vector<8x48xf32>
    %21 = arith.subf %15, %20 : vector<8x48xf32>
    %22 = arith.mulf %21, %21 : vector<8x48xf32>
    %cst_9 = arith.constant dense<0.000000e+00> : vector<8xf32>
    %23 = vector.multi_reduction <add>, %22, %cst_9 [1] : vector<8x48xf32> to vector<8xf32>
    %24 = vector.shape_cast %23 : vector<8xf32> to vector<8x1xf32>
    %cst_10 = arith.constant 4.800000e+01 : f32
    %25 = vector.broadcast %cst_10 : f32 to vector<8x1xf32>
    %26 = arith.divf %24, %25 : vector<8x1xf32>
    %27 = vector.broadcast %19 : vector<8x1xf32> to vector<8x48xf32>
    %28 = arith.subf %15, %27 : vector<8x48xf32>
    %cst_11 = arith.constant 9.99999974E-6 : f32
    %29 = vector.broadcast %cst_11 : f32 to vector<8x1xf32>
    %30 = arith.addf %26, %29 : vector<8x1xf32>
    %31 = math.rsqrt %30 : vector<8x1xf32>
    %32 = vector.broadcast %31 : vector<8x1xf32> to vector<8x48xf32>
    %33 = arith.mulf %28, %32 : vector<8x48xf32>
    %34 = vector.broadcast %5 : vector<1x48xf32> to vector<8x48xf32>
    %35 = arith.mulf %33, %34 : vector<8x48xf32>
    %36 = vector.broadcast %6 : vector<1x48xf32> to vector<8x48xf32>
    %37 = arith.addf %35, %36 : vector<8x48xf32>
    %c0_12 = arith.constant 0 : index
    %c0_13 = arith.constant 0 : index
    %c0_14 = arith.constant 0 : index
    %38 = vector.load %arg5[%c0_12, %c0_13, %c0_14] : memref<1x48x144xbf16, #tpu.memory_space<vmem>>, vector<1x48x144xbf16>
    %39 = vector.shape_cast %38 : vector<1x48x144xbf16> to vector<48x144xbf16>
    %40 = arith.truncf %37 : vector<8x48xf32> to vector<8x48xbf16>
    %cst_15 = arith.constant dense<0.000000e+00> : vector<8x144xf32>
    %41 = tpu.matmul %40, %39, %cst_15 {dimension_numbers = #tpu.dot_dimension_numbers<[1], [0], [0], [1], [0, 0, 1, 1], [], []>} : vector<8x48xbf16>, vector<48x144xbf16>, vector<8x144xf32> -> vector<8x144xf32>
    %42 = vector.extract_strided_slice %41 {offsets = [0, 0], sizes = [8, 8], strides = [1, 1]} : vector<8x144xf32> to vector<8x8xf32>
    %43 = vector.shape_cast %42 : vector<8x8xf32> to vector<1x8x8xf32>
    %44 = vector.extract_strided_slice %41 {offsets = [0, 48], sizes = [8, 8], strides = [1, 1]} : vector<8x144xf32> to vector<8x8xf32>
    %45 = vector.shape_cast %44 : vector<8x8xf32> to vector<1x8x8xf32>
    %46 = vector.extract_strided_slice %41 {offsets = [0, 96], sizes = [8, 8], strides = [1, 1]} : vector<8x144xf32> to vector<8x8xf32>
    %47 = vector.shape_cast %46 : vector<8x8xf32> to vector<1x8x8xf32>
    %48 = arith.truncf %43 : vector<1x8x8xf32> to vector<1x8x8xbf16>
    %49 = arith.truncf %45 : vector<1x8x8xf32> to vector<1x8x8xbf16>
    "tpu.trace_start"() <{level = 10 : i32, message = "bqd,bkd->bqk"}> : () -> ()
    %cst_16 = arith.constant dense<0.000000e+00> : vector<1x8x8xf32>
    %50 = tpu.matmul %48, %49, %cst_16 {dimension_numbers = #tpu.dot_dimension_numbers<[2], [2], [1], [1], [0, 0, 0, 1, 1, 1], [0], [0]>} : vector<1x8x8xbf16>, vector<1x8x8xbf16>, vector<1x8x8xf32> -> vector<1x8x8xf32>
    "tpu.trace_stop"() : () -> ()
    %cst_17 = arith.constant dense<0xFF800000> : vector<1x8xf32>
    %51 = vector.multi_reduction <maximumf>, %50, %cst_17 [2] : vector<1x8x8xf32> to vector<1x8xf32>
    %52 = vector.shape_cast %51 : vector<1x8xf32> to vector<1x8x1xf32>
    %53 = vector.broadcast %52 : vector<1x8x1xf32> to vector<1x8x8xf32>
    %54 = arith.subf %50, %53 : vector<1x8x8xf32>
    %55 = math.exp %54 : vector<1x8x8xf32>
    %cst_18 = arith.constant dense<0.000000e+00> : vector<1x8xf32>
    %56 = vector.multi_reduction <add>, %55, %cst_18 [2] : vector<1x8x8xf32> to vector<1x8xf32>
    %57 = vector.shape_cast %56 : vector<1x8xf32> to vector<1x8x1xf32>
    %58 = vector.broadcast %57 : vector<1x8x1xf32> to vector<1x8x8xf32>
    %59 = arith.divf %55, %58 : vector<1x8x8xf32>
    %60 = arith.truncf %59 : vector<1x8x8xf32> to vector<1x8x8xbf16>
    %61 = arith.truncf %47 : vector<1x8x8xf32> to vector<1x8x8xbf16>
    "tpu.trace_start"() <{level = 10 : i32, message = "bqk,bkd->bqd"}> : () -> ()
    %cst_19 = arith.constant dense<0.000000e+00> : vector<1x8x8xf32>
    %62 = tpu.matmul %60, %61, %cst_19 {dimension_numbers = #tpu.dot_dimension_numbers<[2], [1], [1], [2], [0, 0, 0, 1, 1, 2], [0], [0]>} : vector<1x8x8xbf16>, vector<1x8x8xbf16>, vector<1x8x8xf32> -> vector<1x8x8xf32>
    "tpu.trace_stop"() : () -> ()
    %63 = vector.shape_cast %62 : vector<1x8x8xf32> to vector<8x8xf32>
    %64 = arith.truncf %63 : vector<8x8xf32> to vector<8x8xbf16>
    %c0_20 = arith.constant 0 : index
    %c0_21 = arith.constant 0 : index
    %65 = vector.load %arg12[%c0_20, %c0_21] : memref<8x48xbf16, #tpu.memory_space<vmem>>, vector<8x8xbf16>
    tpu.vector_store %arg12[%c0_20, %c0_21], %64 {strides = array<i32>} : memref<8x48xbf16, #tpu.memory_space<vmem>>, vector<8x8xbf16>,
    %66 = vector.extract_strided_slice %41 {offsets = [0, 8], sizes = [8, 8], strides = [1, 1]} : vector<8x144xf32> to vector<8x8xf32>
    %67 = vector.shape_cast %66 : vector<8x8xf32> to vector<1x8x8xf32>
    %68 = vector.extract_strided_slice %41 {offsets = [0, 56], sizes = [8, 8], strides = [1, 1]} : vector<8x144xf32> to vector<8x8xf32>
    %69 = vector.shape_cast %68 : vector<8x8xf32> to vector<1x8x8xf32>
    %70 = vector.extract_strided_slice %41 {offsets = [0, 104], sizes = [8, 8], strides = [1, 1]} : vector<8x144xf32> to vector<8x8xf32>
    %71 = vector.shape_cast %70 : vector<8x8xf32> to vector<1x8x8xf32>
    %72 = arith.truncf %67 : vector<1x8x8xf32> to vector<1x8x8xbf16>
    %73 = arith.truncf %69 : vector<1x8x8xf32> to vector<1x8x8xbf16>
    "tpu.trace_start"() <{level = 10 : i32, message = "bqd,bkd->bqk"}> : () -> ()
    %cst_22 = arith.constant dense<0.000000e+00> : vector<1x8x8xf32>
    %74 = tpu.matmul %72, %73, %cst_22 {dimension_numbers = #tpu.dot_dimension_numbers<[2], [2], [1], [1], [0, 0, 0, 1, 1, 1], [0], [0]>} : vector<1x8x8xbf16>, vector<1x8x8xbf16>, vector<1x8x8xf32> -> vector<1x8x8xf32>
    "tpu.trace_stop"() : () -> ()
    %cst_23 = arith.constant dense<0xFF800000> : vector<1x8xf32>
    %75 = vector.multi_reduction <maximumf>, %74, %cst_23 [2] : vector<1x8x8xf32> to vector<1x8xf32>
    %76 = vector.shape_cast %75 : vector<1x8xf32> to vector<1x8x1xf32>
    %77 = vector.broadcast %76 : vector<1x8x1xf32> to vector<1x8x8xf32>
    %78 = arith.subf %74, %77 : vector<1x8x8xf32>
    %79 = math.exp %78 : vector<1x8x8xf32>
    %cst_24 = arith.constant dense<0.000000e+00> : vector<1x8xf32>
    %80 = vector.multi_reduction <add>, %79, %cst_24 [2] : vector<1x8x8xf32> to vector<1x8xf32>
    %81 = vector.shape_cast %80 : vector<1x8xf32> to vector<1x8x1xf32>
    %82 = vector.broadcast %81 : vector<1x8x1xf32> to vector<1x8x8xf32>
    %83 = arith.divf %79, %82 : vector<1x8x8xf32>
    %84 = arith.truncf %83 : vector<1x8x8xf32> to vector<1x8x8xbf16>
    %85 = arith.truncf %71 : vector<1x8x8xf32> to vector<1x8x8xbf16>
    "tpu.trace_start"() <{level = 10 : i32, message = "bqk,bkd->bqd"}> : () -> ()
    %cst_25 = arith.constant dense<0.000000e+00> : vector<1x8x8xf32>
    %86 = tpu.matmul %84, %85, %cst_25 {dimension_numbers = #tpu.dot_dimension_numbers<[2], [1], [1], [2], [0, 0, 0, 1, 1, 2], [0], [0]>} : vector<1x8x8xbf16>, vector<1x8x8xbf16>, vector<1x8x8xf32> -> vector<1x8x8xf32>
    "tpu.trace_stop"() : () -> ()
    %87 = vector.shape_cast %86 : vector<1x8x8xf32> to vector<8x8xf32>
    %88 = arith.truncf %87 : vector<8x8xf32> to vector<8x8xbf16>
    %c0_26 = arith.constant 0 : index
    %c8 = arith.constant 8 : index
    %89 = vector.load %arg12[%c0_26, %c8] : memref<8x48xbf16, #tpu.memory_space<vmem>>, vector<8x8xbf16>
    tpu.vector_store %arg12[%c0_26, %c8], %88 {strides = array<i32>} : memref<8x48xbf16, #tpu.memory_space<vmem>>, vector<8x8xbf16>,
    %90 = vector.extract_strided_slice %41 {offsets = [0, 16], sizes = [8, 8], strides = [1, 1]} : vector<8x144xf32> to vector<8x8xf32>
    %91 = vector.shape_cast %90 : vector<8x8xf32> to vector<1x8x8xf32>
    %92 = vector.extract_strided_slice %41 {offsets = [0, 64], sizes = [8, 8], strides = [1, 1]} : vector<8x144xf32> to vector<8x8xf32>
    %93 = vector.shape_cast %92 : vector<8x8xf32> to vector<1x8x8xf32>
    %94 = vector.extract_strided_slice %41 {offsets = [0, 112], sizes = [8, 8], strides = [1, 1]} : vector<8x144xf32> to vector<8x8xf32>
    %95 = vector.shape_cast %94 : vector<8x8xf32> to vector<1x8x8xf32>
    %96 = arith.truncf %91 : vector<1x8x8xf32> to vector<1x8x8xbf16>
    %97 = arith.truncf %93 : vector<1x8x8xf32> to vector<1x8x8xbf16>
    "tpu.trace_start"() <{level = 10 : i32, message = "bqd,bkd->bqk"}> : () -> ()
    %cst_27 = arith.constant dense<0.000000e+00> : vector<1x8x8xf32>
    %98 = tpu.matmul %96, %97, %cst_27 {dimension_numbers = #tpu.dot_dimension_numbers<[2], [2], [1], [1], [0, 0, 0, 1, 1, 1], [0], [0]>} : vector<1x8x8xbf16>, vector<1x8x8xbf16>, vector<1x8x8xf32> -> vector<1x8x8xf32>
    "tpu.trace_stop"() : () -> ()
    %cst_28 = arith.constant dense<0xFF800000> : vector<1x8xf32>
    %99 = vector.multi_reduction <maximumf>, %98, %cst_28 [2] : vector<1x8x8xf32> to vector<1x8xf32>
    %100 = vector.shape_cast %99 : vector<1x8xf32> to vector<1x8x1xf32>
    %101 = vector.broadcast %100 : vector<1x8x1xf32> to vector<1x8x8xf32>
    %102 = arith.subf %98, %101 : vector<1x8x8xf32>
    %103 = math.exp %102 : vector<1x8x8xf32>
    %cst_29 = arith.constant dense<0.000000e+00> : vector<1x8xf32>
    %104 = vector.multi_reduction <add>, %103, %cst_29 [2] : vector<1x8x8xf32> to vector<1x8xf32>
    %105 = vector.shape_cast %104 : vector<1x8xf32> to vector<1x8x1xf32>
    %106 = vector.broadcast %105 : vector<1x8x1xf32> to vector<1x8x8xf32>
    %107 = arith.divf %103, %106 : vector<1x8x8xf32>
    %108 = arith.truncf %107 : vector<1x8x8xf32> to vector<1x8x8xbf16>
    %109 = arith.truncf %95 : vector<1x8x8xf32> to vector<1x8x8xbf16>
    "tpu.trace_start"() <{level = 10 : i32, message = "bqk,bkd->bqd"}> : () -> ()
    %cst_30 = arith.constant dense<0.000000e+00> : vector<1x8x8xf32>
    %110 = tpu.matmul %108, %109, %cst_30 {dimension_numbers = #tpu.dot_dimension_numbers<[2], [1], [1], [2], [0, 0, 0, 1, 1, 2], [0], [0]>} : vector<1x8x8xbf16>, vector<1x8x8xbf16>, vector<1x8x8xf32> -> vector<1x8x8xf32>
    "tpu.trace_stop"() : () -> ()
    %111 = vector.shape_cast %110 : vector<1x8x8xf32> to vector<8x8xf32>
    %112 = arith.truncf %111 : vector<8x8xf32> to vector<8x8xbf16>
    %c0_31 = arith.constant 0 : index
    %c16 = arith.constant 16 : index
    %113 = vector.load %arg12[%c0_31, %c16] : memref<8x48xbf16, #tpu.memory_space<vmem>>, vector<8x8xbf16>
    tpu.vector_store %arg12[%c0_31, %c16], %112 {strides = array<i32>} : memref<8x48xbf16, #tpu.memory_space<vmem>>, vector<8x8xbf16>,
    %114 = vector.extract_strided_slice %41 {offsets = [0, 24], sizes = [8, 8], strides = [1, 1]} : vector<8x144xf32> to vector<8x8xf32>
    %115 = vector.shape_cast %114 : vector<8x8xf32> to vector<1x8x8xf32>
    %116 = vector.extract_strided_slice %41 {offsets = [0, 72], sizes = [8, 8], strides = [1, 1]} : vector<8x144xf32> to vector<8x8xf32>
    %117 = vector.shape_cast %116 : vector<8x8xf32> to vector<1x8x8xf32>
    %118 = vector.extract_strided_slice %41 {offsets = [0, 120], sizes = [8, 8], strides = [1, 1]} : vector<8x144xf32> to vector<8x8xf32>
    %119 = vector.shape_cast %118 : vector<8x8xf32> to vector<1x8x8xf32>
    %120 = arith.truncf %115 : vector<1x8x8xf32> to vector<1x8x8xbf16>
    %121 = arith.truncf %117 : vector<1x8x8xf32> to vector<1x8x8xbf16>
    "tpu.trace_start"() <{level = 10 : i32, message = "bqd,bkd->bqk"}> : () -> ()
    %cst_32 = arith.constant dense<0.000000e+00> : vector<1x8x8xf32>
    %122 = tpu.matmul %120, %121, %cst_32 {dimension_numbers = #tpu.dot_dimension_numbers<[2], [2], [1], [1], [0, 0, 0, 1, 1, 1], [0], [0]>} : vector<1x8x8xbf16>, vector<1x8x8xbf16>, vector<1x8x8xf32> -> vector<1x8x8xf32>
    "tpu.trace_stop"() : () -> ()
    %cst_33 = arith.constant dense<0xFF800000> : vector<1x8xf32>
    %123 = vector.multi_reduction <maximumf>, %122, %cst_33 [2] : vector<1x8x8xf32> to vector<1x8xf32>
    %124 = vector.shape_cast %123 : vector<1x8xf32> to vector<1x8x1xf32>
    %125 = vector.broadcast %124 : vector<1x8x1xf32> to vector<1x8x8xf32>
    %126 = arith.subf %122, %125 : vector<1x8x8xf32>
    %127 = math.exp %126 : vector<1x8x8xf32>
    %cst_34 = arith.constant dense<0.000000e+00> : vector<1x8xf32>
    %128 = vector.multi_reduction <add>, %127, %cst_34 [2] : vector<1x8x8xf32> to vector<1x8xf32>
    %129 = vector.shape_cast %128 : vector<1x8xf32> to vector<1x8x1xf32>
    %130 = vector.broadcast %129 : vector<1x8x1xf32> to vector<1x8x8xf32>
    %131 = arith.divf %127, %130 : vector<1x8x8xf32>
    %132 = arith.truncf %131 : vector<1x8x8xf32> to vector<1x8x8xbf16>
    %133 = arith.truncf %119 : vector<1x8x8xf32> to vector<1x8x8xbf16>
    "tpu.trace_start"() <{level = 10 : i32, message = "bqk,bkd->bqd"}> : () -> ()
    %cst_35 = arith.constant dense<0.000000e+00> : vector<1x8x8xf32>
    %134 = tpu.matmul %132, %133, %cst_35 {dimension_numbers = #tpu.dot_dimension_numbers<[2], [1], [1], [2], [0, 0, 0, 1, 1, 2], [0], [0]>} : vector<1x8x8xbf16>, vector<1x8x8xbf16>, vector<1x8x8xf32> -> vector<1x8x8xf32>
    "tpu.trace_stop"() : () -> ()
    %135 = vector.shape_cast %134 : vector<1x8x8xf32> to vector<8x8xf32>
    %136 = arith.truncf %135 : vector<8x8xf32> to vector<8x8xbf16>
    %c0_36 = arith.constant 0 : index
    %c24 = arith.constant 24 : index
    %137 = vector.load %arg12[%c0_36, %c24] : memref<8x48xbf16, #tpu.memory_space<vmem>>, vector<8x8xbf16>
    tpu.vector_store %arg12[%c0_36, %c24], %136 {strides = array<i32>} : memref<8x48xbf16, #tpu.memory_space<vmem>>, vector<8x8xbf16>,
    %138 = vector.extract_strided_slice %41 {offsets = [0, 32], sizes = [8, 8], strides = [1, 1]} : vector<8x144xf32> to vector<8x8xf32>
    %139 = vector.shape_cast %138 : vector<8x8xf32> to vector<1x8x8xf32>
    %140 = vector.extract_strided_slice %41 {offsets = [0, 80], sizes = [8, 8], strides = [1, 1]} : vector<8x144xf32> to vector<8x8xf32>
    %141 = vector.shape_cast %140 : vector<8x8xf32> to vector<1x8x8xf32>
    %142 = vector.extract_strided_slice %41 {offsets = [0, 128], sizes = [8, 8], strides = [1, 1]} : vector<8x144xf32> to vector<8x8xf32>
    %143 = vector.shape_cast %142 : vector<8x8xf32> to vector<1x8x8xf32>
    %144 = arith.truncf %139 : vector<1x8x8xf32> to vector<1x8x8xbf16>
    %145 = arith.truncf %141 : vector<1x8x8xf32> to vector<1x8x8xbf16>
    "tpu.trace_start"() <{level = 10 : i32, message = "bqd,bkd->bqk"}> : () -> ()
    %cst_37 = arith.constant dense<0.000000e+00> : vector<1x8x8xf32>
    %146 = tpu.matmul %144, %145, %cst_37 {dimension_numbers = #tpu.dot_dimension_numbers<[2], [2], [1], [1], [0, 0, 0, 1, 1, 1], [0], [0]>} : vector<1x8x8xbf16>, vector<1x8x8xbf16>, vector<1x8x8xf32> -> vector<1x8x8xf32>
    "tpu.trace_stop"() : () -> ()
    %cst_38 = arith.constant dense<0xFF800000> : vector<1x8xf32>
    %147 = vector.multi_reduction <maximumf>, %146, %cst_38 [2] : vector<1x8x8xf32> to vector<1x8xf32>
    %148 = vector.shape_cast %147 : vector<1x8xf32> to vector<1x8x1xf32>
    %149 = vector.broadcast %148 : vector<1x8x1xf32> to vector<1x8x8xf32>
    %150 = arith.subf %146, %149 : vector<1x8x8xf32>
    %151 = math.exp %150 : vector<1x8x8xf32>
    %cst_39 = arith.constant dense<0.000000e+00> : vector<1x8xf32>
    %152 = vector.multi_reduction <add>, %151, %cst_39 [2] : vector<1x8x8xf32> to vector<1x8xf32>
    %153 = vector.shape_cast %152 : vector<1x8xf32> to vector<1x8x1xf32>
    %154 = vector.broadcast %153 : vector<1x8x1xf32> to vector<1x8x8xf32>
    %155 = arith.divf %151, %154 : vector<1x8x8xf32>
    %156 = arith.truncf %155 : vector<1x8x8xf32> to vector<1x8x8xbf16>
    %157 = arith.truncf %143 : vector<1x8x8xf32> to vector<1x8x8xbf16>
    "tpu.trace_start"() <{level = 10 : i32, message = "bqk,bkd->bqd"}> : () -> ()
    %cst_40 = arith.constant dense<0.000000e+00> : vector<1x8x8xf32>
    %158 = tpu.matmul %156, %157, %cst_40 {dimension_numbers = #tpu.dot_dimension_numbers<[2], [1], [1], [2], [0, 0, 0, 1, 1, 2], [0], [0]>} : vector<1x8x8xbf16>, vector<1x8x8xbf16>, vector<1x8x8xf32> -> vector<1x8x8xf32>
    "tpu.trace_stop"() : () -> ()
    %159 = vector.shape_cast %158 : vector<1x8x8xf32> to vector<8x8xf32>
    %160 = arith.truncf %159 : vector<8x8xf32> to vector<8x8xbf16>
    %c0_41 = arith.constant 0 : index
    %c32 = arith.constant 32 : index
    %161 = vector.load %arg12[%c0_41, %c32] : memref<8x48xbf16, #tpu.memory_space<vmem>>, vector<8x8xbf16>
    tpu.vector_store %arg12[%c0_41, %c32], %160 {strides = array<i32>} : memref<8x48xbf16, #tpu.memory_space<vmem>>, vector<8x8xbf16>,
    %162 = vector.extract_strided_slice %41 {offsets = [0, 40], sizes = [8, 8], strides = [1, 1]} : vector<8x144xf32> to vector<8x8xf32>
    %163 = vector.shape_cast %162 : vector<8x8xf32> to vector<1x8x8xf32>
    %164 = vector.extract_strided_slice %41 {offsets = [0, 88], sizes = [8, 8], strides = [1, 1]} : vector<8x144xf32> to vector<8x8xf32>
    %165 = vector.shape_cast %164 : vector<8x8xf32> to vector<1x8x8xf32>
    %166 = vector.extract_strided_slice %41 {offsets = [0, 136], sizes = [8, 8], strides = [1, 1]} : vector<8x144xf32> to vector<8x8xf32>
    %167 = vector.shape_cast %166 : vector<8x8xf32> to vector<1x8x8xf32>
    %168 = arith.truncf %163 : vector<1x8x8xf32> to vector<1x8x8xbf16>
    %169 = arith.truncf %165 : vector<1x8x8xf32> to vector<1x8x8xbf16>
    "tpu.trace_start"() <{level = 10 : i32, message = "bqd,bkd->bqk"}> : () -> ()
    %cst_42 = arith.constant dense<0.000000e+00> : vector<1x8x8xf32>
    %170 = tpu.matmul %168, %169, %cst_42 {dimension_numbers = #tpu.dot_dimension_numbers<[2], [2], [1], [1], [0, 0, 0, 1, 1, 1], [0], [0]>} : vector<1x8x8xbf16>, vector<1x8x8xbf16>, vector<1x8x8xf32> -> vector<1x8x8xf32>
    "tpu.trace_stop"() : () -> ()
    %cst_43 = arith.constant dense<0xFF800000> : vector<1x8xf32>
    %171 = vector.multi_reduction <maximumf>, %170, %cst_43 [2] : vector<1x8x8xf32> to vector<1x8xf32>
    %172 = vector.shape_cast %171 : vector<1x8xf32> to vector<1x8x1xf32>
    %173 = vector.broadcast %172 : vector<1x8x1xf32> to vector<1x8x8xf32>
    %174 = arith.subf %170, %173 : vector<1x8x8xf32>
    %175 = math.exp %174 : vector<1x8x8xf32>
    %cst_44 = arith.constant dense<0.000000e+00> : vector<1x8xf32>
    %176 = vector.multi_reduction <add>, %175, %cst_44 [2] : vector<1x8x8xf32> to vector<1x8xf32>
    %177 = vector.shape_cast %176 : vector<1x8xf32> to vector<1x8x1xf32>
    %178 = vector.broadcast %177 : vector<1x8x1xf32> to vector<1x8x8xf32>
    %179 = arith.divf %175, %178 : vector<1x8x8xf32>
    %180 = arith.truncf %179 : vector<1x8x8xf32> to vector<1x8x8xbf16>
    %181 = arith.truncf %167 : vector<1x8x8xf32> to vector<1x8x8xbf16>
    "tpu.trace_start"() <{level = 10 : i32, message = "bqk,bkd->bqd"}> : () -> ()
    %cst_45 = arith.constant dense<0.000000e+00> : vector<1x8x8xf32>
    %182 = tpu.matmul %180, %181, %cst_45 {dimension_numbers = #tpu.dot_dimension_numbers<[2], [1], [1], [2], [0, 0, 0, 1, 1, 2], [0], [0]>} : vector<1x8x8xbf16>, vector<1x8x8xbf16>, vector<1x8x8xf32> -> vector<1x8x8xf32>
    "tpu.trace_stop"() : () -> ()
    %183 = vector.shape_cast %182 : vector<1x8x8xf32> to vector<8x8xf32>
    %184 = arith.truncf %183 : vector<8x8xf32> to vector<8x8xbf16>
    %c0_46 = arith.constant 0 : index
    %c40 = arith.constant 40 : index
    %185 = vector.load %arg12[%c0_46, %c40] : memref<8x48xbf16, #tpu.memory_space<vmem>>, vector<8x8xbf16>
    tpu.vector_store %arg12[%c0_46, %c40], %184 {strides = array<i32>} : memref<8x48xbf16, #tpu.memory_space<vmem>>, vector<8x8xbf16>,
    %c0_47 = arith.constant 0 : index
    %c0_48 = arith.constant 0 : index
    %186 = vector.load %arg12[%c0_47, %c0_48] : memref<8x48xbf16, #tpu.memory_space<vmem>>, vector<8x48xbf16>
    %c0_49 = arith.constant 0 : index
    %c0_50 = arith.constant 0 : index
    %c0_51 = arith.constant 0 : index
    %187 = vector.load %arg6[%c0_49, %c0_50, %c0_51] : memref<1x48x48xbf16, #tpu.memory_space<vmem>>, vector<1x48x48xbf16>
    %188 = vector.shape_cast %187 : vector<1x48x48xbf16> to vector<48x48xbf16>
    %cst_52 = arith.constant dense<0.000000e+00> : vector<8x48xf32>
    %189 = tpu.matmul %186, %188, %cst_52 {dimension_numbers = #tpu.dot_dimension_numbers<[1], [0], [0], [1], [0, 0, 1, 1], [], []>} : vector<8x48xbf16>, vector<48x48xbf16>, vector<8x48xf32> -> vector<8x48xf32>
    %190 = vector.broadcast %9 : vector<1x48xf32> to vector<8x48xf32>
    %191 = arith.addf %189, %190 : vector<8x48xf32>
    %192 = arith.addf %15, %191 : vector<8x48xf32>
    %cst_53 = arith.constant dense<0.000000e+00> : vector<8xf32>
    %193 = vector.multi_reduction <add>, %192, %cst_53 [1] : vector<8x48xf32> to vector<8xf32>
    %194 = vector.shape_cast %193 : vector<8xf32> to vector<8x1xf32>
    %cst_54 = arith.constant 4.800000e+01 : f32
    %195 = vector.broadcast %cst_54 : f32 to vector<8x1xf32>
    %196 = arith.divf %194, %195 : vector<8x1xf32>
    %197 = vector.broadcast %196 : vector<8x1xf32> to vector<8x48xf32>
    %198 = arith.subf %192, %197 : vector<8x48xf32>
    %199 = arith.mulf %198, %198 : vector<8x48xf32>
    %cst_55 = arith.constant dense<0.000000e+00> : vector<8xf32>
    %200 = vector.multi_reduction <add>, %199, %cst_55 [1] : vector<8x48xf32> to vector<8xf32>
    %201 = vector.shape_cast %200 : vector<8xf32> to vector<8x1xf32>
    %cst_56 = arith.constant 4.800000e+01 : f32
    %202 = vector.broadcast %cst_56 : f32 to vector<8x1xf32>
    %203 = arith.divf %201, %202 : vector<8x1xf32>
    %204 = vector.broadcast %196 : vector<8x1xf32> to vector<8x48xf32>
    %205 = arith.subf %192, %204 : vector<8x48xf32>
    %cst_57 = arith.constant 9.99999974E-6 : f32
    %206 = vector.broadcast %cst_57 : f32 to vector<8x1xf32>
    %207 = arith.addf %203, %206 : vector<8x1xf32>
    %208 = math.rsqrt %207 : vector<8x1xf32>
    %209 = vector.broadcast %208 : vector<8x1xf32> to vector<8x48xf32>
    %210 = arith.mulf %205, %209 : vector<8x48xf32>
    %211 = vector.broadcast %7 : vector<1x48xf32> to vector<8x48xf32>
    %212 = arith.mulf %210, %211 : vector<8x48xf32>
    %213 = vector.broadcast %8 : vector<1x48xf32> to vector<8x48xf32>
    %214 = arith.addf %212, %213 : vector<8x48xf32>
    %c0_58 = arith.constant 0 : index
    %c0_59 = arith.constant 0 : index
    %c0_60 = arith.constant 0 : index
    %215 = vector.load %arg7[%c0_58, %c0_59, %c0_60] : memref<1x48x192xbf16, #tpu.memory_space<vmem>>, vector<1x48x192xbf16>
    %216 = vector.shape_cast %215 : vector<1x48x192xbf16> to vector<48x192xbf16>
    %217 = arith.truncf %214 : vector<8x48xf32> to vector<8x48xbf16>
    %cst_61 = arith.constant dense<0.000000e+00> : vector<8x192xf32>
    %218 = tpu.matmul %217, %216, %cst_61 {dimension_numbers = #tpu.dot_dimension_numbers<[1], [0], [0], [1], [0, 0, 1, 1], [], []>} : vector<8x48xbf16>, vector<48x192xbf16>, vector<8x192xf32> -> vector<8x192xf32>
    %219 = vector.broadcast %11 : vector<1x192xf32> to vector<8x192xf32>
    %220 = arith.addf %218, %219 : vector<8x192xf32>
    %cst_62 = arith.constant 5.000000e-01 : f32
    %221 = vector.broadcast %cst_62 : f32 to vector<8x192xf32>
    %222 = arith.mulf %221, %220 : vector<8x192xf32>
    %cst_63 = arith.constant 0.707106769 : f32
    %223 = vector.broadcast %cst_63 : f32 to vector<8x192xf32>
    %224 = arith.mulf %220, %223 : vector<8x192xf32>
    %225 = math.erf %224 : vector<8x192xf32>
    %cst_64 = arith.constant 1.000000e+00 : f32
    %226 = vector.broadcast %cst_64 : f32 to vector<8x192xf32>
    %227 = arith.addf %226, %225 : vector<8x192xf32>
    %228 = arith.mulf %222, %227 : vector<8x192xf32>
    %c0_65 = arith.constant 0 : index
    %c0_66 = arith.constant 0 : index
    %c0_67 = arith.constant 0 : index
    %229 = vector.load %arg8[%c0_65, %c0_66, %c0_67] : memref<1x192x48xbf16, #tpu.memory_space<vmem>>, vector<1x192x48xbf16>
    %230 = vector.shape_cast %229 : vector<1x192x48xbf16> to vector<192x48xbf16>
    %231 = arith.truncf %228 : vector<8x192xf32> to vector<8x192xbf16>
    %cst_68 = arith.constant dense<0.000000e+00> : vector<8x48xf32>
    %232 = tpu.matmul %231, %230, %cst_68 {dimension_numbers = #tpu.dot_dimension_numbers<[1], [0], [0], [1], [0, 0, 1, 1], [], []>} : vector<8x192xbf16>, vector<192x48xbf16>, vector<8x48xf32> -> vector<8x48xf32>
    %233 = vector.broadcast %10 : vector<1x48xf32> to vector<8x48xf32>
    %234 = arith.addf %232, %233 : vector<8x48xf32>
    %235 = arith.addf %192, %234 : vector<8x48xf32>
    %c0_69 = arith.constant 0 : index
    %c0_70 = arith.constant 0 : index
    %236 = vector.load %arg11[%c0_69, %c0_70] : memref<8x48xf32, #tpu.memory_space<vmem>>, vector<8x48xf32>
    tpu.vector_store %arg11[%c0_69, %c0_70], %235 {strides = array<i32>} : memref<8x48xf32, #tpu.memory_space<vmem>>, vector<8x48xf32>,
    %c1_i32 = arith.constant 1 : i32
    %237 = arith.cmpi eq, %arg1, %c1_i32 : i32
    %238 = arith.extui %237 : i1 to i32
    %c0_i32_71 = arith.constant 0 : i32
    %239 = arith.cmpi ne, %238, %c0_i32_71 : i32
    scf.if %239 {
      %c0_72 = arith.constant 0 : index
      %c0_73 = arith.constant 0 : index
      %240 = vector.load %arg9[%c0_72, %c0_73] : memref<2x48xf32, #tpu.memory_space<vmem>>, vector<1x48xf32>
      %c1 = arith.constant 1 : index
      %c0_74 = arith.constant 0 : index
      %241 = vector.load %arg9[%c1, %c0_74] : memref<2x48xf32, #tpu.memory_space<vmem>>, vector<1x48xf32>
      %242 = vector.shape_cast %235 : vector<8x48xf32> to vector<1x8x48xf32>
      %cst_75 = arith.constant dense<0.000000e+00> : vector<1x8xf32>
      %243 = vector.multi_reduction <add>, %242, %cst_75 [2] : vector<1x8x48xf32> to vector<1x8xf32>
      %244 = vector.shape_cast %243 : vector<1x8xf32> to vector<1x8x1xf32>
      %cst_76 = arith.constant 4.800000e+01 : f32
      %245 = vector.broadcast %cst_76 : f32 to vector<1x8x1xf32>
      %246 = arith.divf %244, %245 : vector<1x8x1xf32>
      %247 = vector.broadcast %246 : vector<1x8x1xf32> to vector<1x8x48xf32>
      %248 = arith.subf %242, %247 : vector<1x8x48xf32>
      %249 = arith.mulf %248, %248 : vector<1x8x48xf32>
      %cst_77 = arith.constant dense<0.000000e+00> : vector<1x8xf32>
      %250 = vector.multi_reduction <add>, %249, %cst_77 [2] : vector<1x8x48xf32> to vector<1x8xf32>
      %251 = vector.shape_cast %250 : vector<1x8xf32> to vector<1x8x1xf32>
      %cst_78 = arith.constant 4.800000e+01 : f32
      %252 = vector.broadcast %cst_78 : f32 to vector<1x8x1xf32>
      %253 = arith.divf %251, %252 : vector<1x8x1xf32>
      %254 = vector.broadcast %246 : vector<1x8x1xf32> to vector<1x8x48xf32>
      %255 = arith.subf %242, %254 : vector<1x8x48xf32>
      %cst_79 = arith.constant 9.99999974E-6 : f32
      %256 = vector.broadcast %cst_79 : f32 to vector<1x8x1xf32>
      %257 = arith.addf %253, %256 : vector<1x8x1xf32>
      %258 = math.rsqrt %257 : vector<1x8x1xf32>
      %259 = vector.broadcast %258 : vector<1x8x1xf32> to vector<1x8x48xf32>
      %260 = arith.mulf %255, %259 : vector<1x8x48xf32>
      %261 = vector.shape_cast %240 : vector<1x48xf32> to vector<1x1x48xf32>
      %262 = vector.broadcast %261 : vector<1x1x48xf32> to vector<1x8x48xf32>
      %263 = arith.mulf %260, %262 : vector<1x8x48xf32>
      %264 = vector.shape_cast %241 : vector<1x48xf32> to vector<1x1x48xf32>
      %265 = vector.broadcast %264 : vector<1x1x48xf32> to vector<1x8x48xf32>
      %266 = arith.addf %263, %265 : vector<1x8x48xf32>
      %c0_80 = arith.constant 0 : index
      %c0_81 = arith.constant 0 : index
      %c0_82 = arith.constant 0 : index
      %267 = vector.load %arg10[%c0_80, %c0_81, %c0_82] : memref<1x8x48xf32, #tpu.memory_space<vmem>>, vector<1x8x48xf32>
      tpu.vector_store %arg10[%c0_80, %c0_81, %c0_82], %266 {strides = array<i32>} : memref<1x8x48xf32, #tpu.memory_space<vmem>>, vector<1x8x48xf32>,
    } else {
    }
    return
  }
  func.func @transform_0(%arg0: i32, %arg1: i32) -> (i32, i32, i32) {
    %c0_i32 = arith.constant 0 : i32
    %c0_i32_0 = arith.constant 0 : i32
    %c0_i32_1 = arith.constant 0 : i32
    return %arg0, %c0_i32, %c0_i32_0 : i32, i32, i32
  }
  func.func @transform_1(%arg0: i32, %arg1: i32) -> (i32, i32, i32) {
    %c0_i32 = arith.constant 0 : i32
    %c0_i32_0 = arith.constant 0 : i32
    %c0_i32_1 = arith.constant 0 : i32
    return %arg0, %c0_i32, %c0_i32_0 : i32, i32, i32
  }
  func.func @transform_2(%arg0: i32, %arg1: i32) -> (i32, i32, i32) {
    %c0_i32 = arith.constant 0 : i32
    %c0_i32_0 = arith.constant 0 : i32
    %c0_i32_1 = arith.constant 0 : i32
    return %arg1, %c0_i32, %c0_i32_0 : i32, i32, i32
  }
  func.func @transform_3(%arg0: i32, %arg1: i32) -> (i32, i32, i32) {
    %c0_i32 = arith.constant 0 : i32
    %c0_i32_0 = arith.constant 0 : i32
    %c0_i32_1 = arith.constant 0 : i32
    return %arg1, %c0_i32, %c0_i32_0 : i32, i32, i32
  }
  func.func @transform_4(%arg0: i32, %arg1: i32) -> (i32, i32, i32) {
    %c0_i32 = arith.constant 0 : i32
    %c0_i32_0 = arith.constant 0 : i32
    %c0_i32_1 = arith.constant 0 : i32
    return %arg1, %c0_i32, %c0_i32_0 : i32, i32, i32
  }
  func.func @transform_5(%arg0: i32, %arg1: i32) -> (i32, i32, i32) {
    %c0_i32 = arith.constant 0 : i32
    %c0_i32_0 = arith.constant 0 : i32
    %c0_i32_1 = arith.constant 0 : i32
    return %arg1, %c0_i32, %c0_i32_0 : i32, i32, i32
  }
  func.func @transform_6(%arg0: i32, %arg1: i32) -> (i32, i32, i32) {
    %c0_i32 = arith.constant 0 : i32
    %c0_i32_0 = arith.constant 0 : i32
    %c0_i32_1 = arith.constant 0 : i32
    return %arg1, %c0_i32, %c0_i32_0 : i32, i32, i32
  }
  func.func @transform_7(%arg0: i32, %arg1: i32) -> (i32, i32) {
    %c0_i32 = arith.constant 0 : i32
    %c0_i32_0 = arith.constant 0 : i32
    %c0_i32_1 = arith.constant 0 : i32
    return %c0_i32, %c0_i32_0 : i32, i32
  }
  func.func @transform_8(%arg0: i32, %arg1: i32) -> (i32, i32, i32) {
    %c0_i32 = arith.constant 0 : i32
    %c0_i32_0 = arith.constant 0 : i32
    %c0_i32_1 = arith.constant 0 : i32
    return %arg0, %c0_i32, %c0_i32_0 : i32, i32, i32
  }
}

</mosaic_0001>

<llo_original>
// kernel: tpu_custom_call.1
$region0: #{tpu_custom_call.1}
  #allocation0 [shape = 'u32[]', space=smem, size = 0x4, offset = 0x4, fixed_abs, tag = 'smem constant byte address 0x4 - core index']
  #allocation1 [shape = 'u32[144,128]{1,0:T(1,128)}', space=vmem, size = 0x12000, scoped, tag = 'internal scratch']
  #allocation2 [shape = 'f32[8,48]{1,0:T(8,128)}', space=vmem, size = 0x1000, scoped, tag = 'scratch operand']
  #allocation3 [shape = 'bf16[8,48]{1,0:T(8,128)(2,1)}', space=vmem, size = 0x800, scoped, tag = 'scratch operand']
  %s0 = inlined_call_operand.vmem [shape: f32[2,8,48], index: 0, kind: input, shape index: {}]
  %s1 = inlined_call_operand.hbm [shape: f32[2,8,48], index: 1, kind: input, shape index: {}]
  %s2 = inlined_call_operand.vmem [shape: f32[2,8,192], index: 2, kind: input, shape index: {}]
  %s3 = inlined_call_operand.vmem [shape: bf16[2,48,144], index: 3, kind: input, shape index: {}]
  %s4 = inlined_call_operand.vmem [shape: bf16[2,48,48], index: 4, kind: input, shape index: {}]
  %s5 = inlined_call_operand.vmem [shape: bf16[2,48,192], index: 5, kind: input, shape index: {}]
  %s6 = inlined_call_operand.vmem [shape: bf16[2,192,48], index: 6, kind: input, shape index: {}]
  %s7 = inlined_call_operand.vmem [shape: f32[2,48], index: 7, kind: input, shape index: {}]
  %s8 = inlined_call_operand.hbm [shape: f32[2,8,48], index: 8, kind: output, shape index: {}]
  %s9 = sld [smem:[#allocation0]]
  $region77: #{tpu_custom_call.1} parent=0
    _
  %s11 = ssub.s32 1, %s9
  %s12 = scalar_select 0, %s11, %s9
  $region1: #{tpu_custom_call.1} parent=0
    #allocation4 [shape = 'u8[8192]{0}', space=vmem, size = 0x2000, scoped, tag = 'input window, operand 1']
    #allocation5 [shape = 's32[2]{0}', space=sflag, size = 0x8, scoped, tag = 'scoped memory for tpu_custom_call.1']
    #allocation6 [shape = 's32[2]{0}', space=sflag, size = 0x8, scoped, tag = 'scoped memory for tpu_custom_call.1']
    #allocation7 [shape = 'u8[8192]{0}', space=vmem, size = 0x2000, scoped, tag = 'output window, operand 0']
    %13 = vsyncpa [#allocation5], 0
    %s14 = scalar_lea.sflag [#allocation5], 1
    %15 = vsyncpa %s14, 0
    %16 = vsyncpa [#allocation6], 0
    %s17 = scalar_lea.sflag [#allocation6], 1
    %18 = vsyncpa %s17, 0
    loop: start=0, step=1, limit=6
    $region2: #{tpu_custom_call.1} parent=1 // loop_pre_header
      _
    $region3: #{tpu_custom_call.1} parent=1 // loop_header
      %s20 = sphi 0, %s24
      %p21 = scmp.ge.s32.totalorder %s20, 6
      %s27 = sphi 0, %s39
      %s28 = sphi 0, %s35
      %s29 = sphi 0, %s27
      %s30 = sphi 0, %s28
      %s31 = sphi 0, %s29
      %s32 = sphi 0, %s30
      %s42 = sphi 0, %s44
      %s45 = sphi 0, %s42
      %s46 = sphi 0, %s45
      %s62 = sphi 0, %s46
      %s68 = sphi 0, %s70
      %s71 = sphi 0, %s68
      %s72 = sphi 0, %s71
      %s88 = sphi 0, %s72
      %s94 = sphi 0, %s96
      %s97 = sphi 0, %s94
      %s98 = sphi 0, %s97
      %s114 = sphi 0, %s98
      %s120 = sphi 0, %s122
      %s123 = sphi 0, %s120
      %s124 = sphi 0, %s123
      %s140 = sphi 0, %s124
      %s146 = sphi 0, %s148
      %s149 = sphi 0, %s146
      %s150 = sphi 0, %s149
      %s166 = sphi 0, %s150
      %s172 = sphi 0, %s174
      %s175 = sphi 0, %s172
      %s176 = sphi 0, %s175
      %s192 = sphi 0, %s176
      %s198 = sphi 0, %s200
      %s201 = sphi 0, %s198
      %s202 = sphi 0, %s201
      %s218 = sphi 0, %s202
      %s222 = sphi 0, %s222
      %s224 = sphi 0, %s222
      %s225 = sphi 0, %s224
      %s239 = sphi 0, %s225
      %s245 = sphi 0, %s247
      %s248 = sphi 0, %s245
      %s249 = sphi 0, %s248
      %s265 = sphi 0, %s249
    $region4: #{tpu_custom_call.1} parent=1 // loop_header_branch
      %23 = sbr.rel (%p21) target = $region8
    $region5: #{tpu_custom_call.1} parent=1 // loop_body
      %s25 = ssub.s32 %s20, 1
      %s26 = ssub.s32 %s20, 2
      %s33 = sadd.s32 1, %s28
      %p34 = scmp.ge.s32.totalorder %s33, 2
      %s35 = scalar_select %p34, 0, %s33
      %s36 = sadd.s32 1, %s27
      %s37 = scalar_select %p34, %s36, %s27
      %p38 = scmp.ge.s32.totalorder %s37, 2
      %s39 = scalar_select %p38, 0, %s37
      %s40 = ssub.s32 %s27, %s39
      %p41 = scmp.eq.s32.totalorder %s40, 0
      %s43 = sadd.s32 %s42, 1
      %s44 = scalar_select %p41, %s42, %s43
      %p47 = pneg %p41
      %p48 = scmp.eq.s32.totalorder %s20, 3
      %p49 = por %p47, %p48
      %p50 = scmp.ne.s32.totalorder %s42, %s45
      %p51 = scmp.eq.s32.totalorder %s20, 0
      %p52 = por %p50, %p51
      %p53 = scmp.ne.s32.totalorder %s42, %s45
      %p54 = scmp.eq.s32.totalorder %s25, 3
      %p55 = por %p53, %p54
      %p56 = scmp.ne.s32.totalorder %s45, %s46
      %p57 = scmp.eq.s32.totalorder %s25, 0
      %p58 = por %p56, %p57
      %p59 = scmp.ne.s32.totalorder %s45, %s46
      %p60 = scmp.eq.s32.totalorder %s26, 3
      %p61 = por %p59, %p60
      %p63 = scmp.ne.s32.totalorder %s46, %s62
      %p64 = scmp.eq.s32.totalorder %s26, 0
      %p65 = por %p63, %p64
      %s66 = ssub.s32 %s27, %s39
      %p67 = scmp.eq.s32.totalorder %s66, 0
      %s69 = sadd.s32 %s68, 1
      %s70 = scalar_select %p67, %s68, %s69
      %p73 = pneg %p67
      %p74 = scmp.eq.s32.totalorder %s20, 3
      %p75 = por %p73, %p74
      %p76 = scmp.ne.s32.totalorder %s68, %s71
      %p77 = scmp.eq.s32.totalorder %s20, 0
      %p78 = por %p76, %p77
      %p79 = scmp.ne.s32.totalorder %s68, %s71
      %p80 = scmp.eq.s32.totalorder %s25, 3
      %p81 = por %p79, %p80
      %p82 = scmp.ne.s32.totalorder %s71, %s72
      %p83 = scmp.eq.s32.totalorder %s25, 0
      %p84 = por %p82, %p83
      %p85 = scmp.ne.s32.totalorder %s71, %s72
      %p86 = scmp.eq.s32.totalorder %s26, 3
      %p87 = por %p85, %p86
      %p89 = scmp.ne.s32.totalorder %s72, %s88
      %p90 = scmp.eq.s32.totalorder %s26, 0
      %p91 = por %p89, %p90
      %s92 = ssub.s32 %s28, %s35
      %p93 = scmp.eq.s32.totalorder %s92, 0
      %s95 = sadd.s32 %s94, 1
      %s96 = scalar_select %p93, %s94, %s95
      %p99 = pneg %p93
      %p100 = scmp.eq.s32.totalorder %s20, 3
      %p101 = por %p99, %p100
      %p102 = scmp.ne.s32.totalorder %s94, %s97
      %p103 = scmp.eq.s32.totalorder %s20, 0
      %p104 = por %p102, %p103
      %p105 = scmp.ne.s32.totalorder %s94, %s97
      %p106 = scmp.eq.s32.totalorder %s25, 3
      %p107 = por %p105, %p106
      %p108 = scmp.ne.s32.totalorder %s97, %s98
      %p109 = scmp.eq.s32.totalorder %s25, 0
      %p110 = por %p108, %p109
      %p111 = scmp.ne.s32.totalorder %s97, %s98
      %p112 = scmp.eq.s32.totalorder %s26, 3
      %p113 = por %p111, %p112
      %p115 = scmp.ne.s32.totalorder %s98, %s114
      %p116 = scmp.eq.s32.totalorder %s26, 0
      %p117 = por %p115, %p116
      %s118 = ssub.s32 %s28, %s35
      %p119 = scmp.eq.s32.totalorder %s118, 0
      %s121 = sadd.s32 %s120, 1
      %s122 = scalar_select %p119, %s120, %s121
      %p125 = pneg %p119
      %p126 = scmp.eq.s32.totalorder %s20, 3
      %p127 = por %p125, %p126
      %p128 = scmp.ne.s32.totalorder %s120, %s123
      %p129 = scmp.eq.s32.totalorder %s20, 0
      %p130 = por %p128, %p129
      %p131 = scmp.ne.s32.totalorder %s120, %s123
      %p132 = scmp.eq.s32.totalorder %s25, 3
      %p133 = por %p131, %p132
      %p134 = scmp.ne.s32.totalorder %s123, %s124
      %p135 = scmp.eq.s32.totalorder %s25, 0
      %p136 = por %p134, %p135
      %p137 = scmp.ne.s32.totalorder %s123, %s124
      %p138 = scmp.eq.s32.totalorder %s26, 3
      %p139 = por %p137, %p138
      %p141 = scmp.ne.s32.totalorder %s124, %s140
      %p142 = scmp.eq.s32.totalorder %s26, 0
      %p143 = por %p141, %p142
      %s144 = ssub.s32 %s28, %s35
      %p145 = scmp.eq.s32.totalorder %s144, 0
      %s147 = sadd.s32 %s146, 1
      %s148 = scalar_select %p145, %s146, %s147
      %p151 = pneg %p145
      %p152 = scmp.eq.s32.totalorder %s20, 3
      %p153 = por %p151, %p152
      %p154 = scmp.ne.s32.totalorder %s146, %s149
      %p155 = scmp.eq.s32.totalorder %s20, 0
      %p156 = por %p154, %p155
      %p157 = scmp.ne.s32.totalorder %s146, %s149
      %p158 = scmp.eq.s32.totalorder %s25, 3
      %p159 = por %p157, %p158
      %p160 = scmp.ne.s32.totalorder %s149, %s150
      %p161 = scmp.eq.s32.totalorder %s25, 0
      %p162 = por %p160, %p161
      %p163 = scmp.ne.s32.totalorder %s149, %s150
      %p164 = scmp.eq.s32.totalorder %s26, 3
      %p165 = por %p163, %p164
      %p167 = scmp.ne.s32.totalorder %s150, %s166
      %p168 = scmp.eq.s32.totalorder %s26, 0
      %p169 = por %p167, %p168
      %s170 = ssub.s32 %s28, %s35
      %p171 = scmp.eq.s32.totalorder %s170, 0
      %s173 = sadd.s32 %s172, 1
      %s174 = scalar_select %p171, %s172, %s173
      %p177 = pneg %p171
      %p178 = scmp.eq.s32.totalorder %s20, 3
      %p179 = por %p177, %p178
      %p180 = scmp.ne.s32.totalorder %s172, %s175
      %p181 = scmp.eq.s32.totalorder %s20, 0
      %p182 = por %p180, %p181
      %p183 = scmp.ne.s32.totalorder %s172, %s175
      %p184 = scmp.eq.s32.totalorder %s25, 3
      %p185 = por %p183, %p184
      %p186 = scmp.ne.s32.totalorder %s175, %s176
      %p187 = scmp.eq.s32.totalorder %s25, 0
      %p188 = por %p186, %p187
      %p189 = scmp.ne.s32.totalorder %s175, %s176
      %p190 = scmp.eq.s32.totalorder %s26, 3
      %p191 = por %p189, %p190
      %p193 = scmp.ne.s32.totalorder %s176, %s192
      %p194 = scmp.eq.s32.totalorder %s26, 0
      %p195 = por %p193, %p194
      %s196 = ssub.s32 %s28, %s35
      %p197 = scmp.eq.s32.totalorder %s196, 0
      %s199 = sadd.s32 %s198, 1
      %s200 = scalar_select %p197, %s198, %s199
      %p203 = pneg %p197
      %p204 = scmp.eq.s32.totalorder %s20, 3
      %p205 = por %p203, %p204
      %p206 = scmp.ne.s32.totalorder %s198, %s201
      %p207 = scmp.eq.s32.totalorder %s20, 0
      %p208 = por %p206, %p207
      %p209 = scmp.ne.s32.totalorder %s198, %s201
      %p210 = scmp.eq.s32.totalorder %s25, 3
      %p211 = por %p209, %p210
      %p212 = scmp.ne.s32.totalorder %s201, %s202
      %p213 = scmp.eq.s32.totalorder %s25, 0
      %p214 = por %p212, %p213
      %p215 = scmp.ne.s32.totalorder %s201, %s202
      %p216 = scmp.eq.s32.totalorder %s26, 3
      %p217 = por %p215, %p216
      %p219 = scmp.ne.s32.totalorder %s202, %s218
      %p220 = scmp.eq.s32.totalorder %s26, 0
      %p221 = por %p219, %p220
      %s223 = sadd.s32 %s222, 1
      %p226 = scmp.eq.s32.totalorder %s20, 3
      %p227 = scmp.ne.s32.totalorder %s222, %s224
      %p228 = scmp.eq.s32.totalorder %s20, 0
      %p229 = por %p227, %p228
      %p230 = scmp.ne.s32.totalorder %s222, %s224
      %p231 = scmp.eq.s32.totalorder %s25, 3
      %p232 = por %p230, %p231
      %p233 = scmp.ne.s32.totalorder %s224, %s225
      %p234 = scmp.eq.s32.totalorder %s25, 0
      %p235 = por %p233, %p234
      %p236 = scmp.ne.s32.totalorder %s224, %s225
      %p237 = scmp.eq.s32.totalorder %s26, 3
      %p238 = por %p236, %p237
      %p240 = scmp.ne.s32.totalorder %s225, %s239
      %p241 = scmp.eq.s32.totalorder %s26, 0
      %p242 = por %p240, %p241
      %s243 = ssub.s32 %s27, %s39
      %p244 = scmp.eq.s32.totalorder %s243, 0
      %s246 = sadd.s32 %s245, 1
      %s247 = scalar_select %p244, %s245, %s246
      %p250 = pneg %p244
      %p251 = scmp.eq.s32.totalorder %s20, 3
      %p252 = por %p250, %p251
      %p253 = scmp.ne.s32.totalorder %s245, %s248
      %p254 = scmp.eq.s32.totalorder %s20, 0
      %p255 = por %p253, %p254
      %p256 = scmp.ne.s32.totalorder %s245, %s248
      %p257 = scmp.eq.s32.totalorder %s25, 3
      %p258 = por %p256, %p257
      %p259 = scmp.ne.s32.totalorder %s248, %s249
      %p260 = scmp.eq.s32.totalorder %s25, 0
      %p261 = por %p259, %p260
      %p262 = scmp.ne.s32.totalorder %s248, %s249
      %p263 = scmp.eq.s32.totalorder %s26, 3
      %p264 = por %p262, %p263
      %p266 = scmp.ne.s32.totalorder %s249, %s265
      %p267 = scmp.eq.s32.totalorder %s26, 0
      %p268 = por %p266, %p267
      %p269 = scmp.le.s32.totalorder 1, %s20
      %p270 = scmp.lt.s32.totalorder %s20, 5
      %p271 = pnand %p269, %p270
      %p272 = pneg %p271
      // Predicated region
      $region9: #{tpu_custom_call.1} parent=5 // pred_check
        _
      $region10: #{tpu_custom_call.1} parent=5 // pred_check_branch
        %274 = sbr.rel (%p271) target = $region12
      $region11: #{tpu_custom_call.1} parent=5 // pred_region
        %s275 = ssub.s32 %s20, 1
        // Predicated region
        $region13: #{tpu_custom_call.1} parent=11 // pred_check
          %p276 = pneg %p235
        $region14: #{tpu_custom_call.1} parent=11 // pred_check_branch
          %278 = sbr.rel (%p276) target = $region16
        $region15: #{tpu_custom_call.1} parent=11 // pred_region
          _
        $region16: #{tpu_custom_call.1} parent=11 // pred_fallthru
          _
      $region12: #{tpu_custom_call.1} parent=5 // pred_fallthru
        _
      %p279 = scmp.lt.s32.totalorder %s20, 4
      // Predicated region
      $region17: #{tpu_custom_call.1} parent=5 // pred_check
        %p280 = pneg %p279
      $region18: #{tpu_custom_call.1} parent=5 // pred_check_branch
        %282 = sbr.rel (%p280) target = $region20
      $region19: #{tpu_custom_call.1} parent=5 // pred_region
        // Predicated region
        $region21: #{tpu_custom_call.1} parent=19 // pred_check
          %p283 = pneg %p52
        $region22: #{tpu_custom_call.1} parent=19 // pred_check_branch
          %285 = sbr.rel (%p283) target = $region24
        $region23: #{tpu_custom_call.1} parent=19 // pred_region
          %p286 = scmp.lt.s32.totalorder %s27, 1
          %s287 = scalar_select %p286, %s27, 1
          %s288 = smul.addr %s287, 8
          %s289 = scalar_lea.vmem %s0, %s288
        $region24: #{tpu_custom_call.1} parent=19 // pred_fallthru
          _
        // Predicated region
        $region25: #{tpu_custom_call.1} parent=19 // pred_check
          %p290 = pneg %p78
        $region26: #{tpu_custom_call.1} parent=19 // pred_check_branch
          %292 = sbr.rel (%p290) target = $region28
        $region27: #{tpu_custom_call.1} parent=19 // pred_region
          %s293 = sand.u32 %s68, 1
          %s294 = scalar_lea.sflag [#allocation5], %s293
          %s295 = sand.u32 %s68, 1
          %s296 = smul.addr %s295, 8
          %s297 = scalar_lea.vmem [#allocation4], %s296
          %s299 = ssub.s32 128, 128
          %300 = vsyncadd %s294, %s299
          %s301 = smul.addr %s27, 128
          %s302 = scalar_lea.hbm %s1, %s301
          %s304 = sshll.u32 %s297, 4
          %s305 = int_to_ptr.vmem [resolvable:$true] %s304
          %307 = dma.hbm_to_vmem [thread:$0]  %s302, 128, %s305, %s294
        $region28: #{tpu_custom_call.1} parent=19 // pred_fallthru
          _
        // Predicated region
        $region29: #{tpu_custom_call.1} parent=19 // pred_check
          %p308 = pneg %p104
        $region30: #{tpu_custom_call.1} parent=19 // pred_check_branch
          %310 = sbr.rel (%p308) target = $region32
        $region31: #{tpu_custom_call.1} parent=19 // pred_region
          %p311 = scmp.lt.s32.totalorder %s28, 1
          %s312 = scalar_select %p311, %s28, 1
          %s313 = smul.addr %s312, 2
          %s314 = smul.addr %s313, 8
          %s315 = scalar_lea.vmem %s2, %s314
        $region32: #{tpu_custom_call.1} parent=19 // pred_fallthru
          _
        // Predicated region
        $region33: #{tpu_custom_call.1} parent=19 // pred_check
          %p316 = pneg %p130
        $region34: #{tpu_custom_call.1} parent=19 // pred_check_branch
          %318 = sbr.rel (%p316) target = $region36
        $region35: #{tpu_custom_call.1} parent=19 // pred_region
          %p319 = scmp.lt.s32.totalorder %s28, 1
          %s320 = scalar_select %p319, %s28, 1
          %s321 = smul.addr %s320, 12
          %s322 = smul.addr %s321, 4
          %s323 = scalar_lea.vmem %s3, %s322
        $region36: #{tpu_custom_call.1} parent=19 // pred_fallthru
          _
        // Predicated region
        $region37: #{tpu_custom_call.1} parent=19 // pred_check
          %p324 = pneg %p156
        $region38: #{tpu_custom_call.1} parent=19 // pred_check_branch
          %326 = sbr.rel (%p324) target = $region40
        $region39: #{tpu_custom_call.1} parent=19 // pred_region
          %p327 = scmp.lt.s32.totalorder %s28, 1
          %s328 = scalar_select %p327, %s28, 1
          %s329 = smul.addr %s328, 6
          %s330 = smul.addr %s329, 4
          %s331 = scalar_lea.vmem %s4, %s330
        $region40: #{tpu_custom_call.1} parent=19 // pred_fallthru
          _
        // Predicated region
        $region41: #{tpu_custom_call.1} parent=19 // pred_check
          %p332 = pneg %p182
        $region42: #{tpu_custom_call.1} parent=19 // pred_check_branch
          %334 = sbr.rel (%p332) target = $region44
        $region43: #{tpu_custom_call.1} parent=19 // pred_region
          %p335 = scmp.lt.s32.totalorder %s28, 1
          %s336 = scalar_select %p335, %s28, 1
          %s337 = smul.addr %s336, 12
          %s338 = smul.addr %s337, 4
          %s339 = scalar_lea.vmem %s5, %s338
        $region44: #{tpu_custom_call.1} parent=19 // pred_fallthru
          _
        // Predicated region
        $region45: #{tpu_custom_call.1} parent=19 // pred_check
          %p340 = pneg %p208
        $region46: #{tpu_custom_call.1} parent=19 // pred_check_branch
          %342 = sbr.rel (%p340) target = $region48
        $region47: #{tpu_custom_call.1} parent=19 // pred_region
          %p343 = scmp.lt.s32.totalorder %s28, 1
          %s344 = scalar_select %p343, %s28, 1
          %s345 = smul.addr %s344, 24
          %s346 = smul.addr %s345, 4
          %s347 = scalar_lea.vmem %s6, %s346
        $region48: #{tpu_custom_call.1} parent=19 // pred_fallthru
          _
      $region20: #{tpu_custom_call.1} parent=5 // pred_fallthru
        _
      %p348 = scmp.le.s32.totalorder 1, %s20
      %p349 = scmp.lt.s32.totalorder %s20, 5
      %p350 = pnand %p348, %p349
      %p351 = pneg %p350
      // Predicated region
      $region49: #{tpu_custom_call.1} parent=5 // pred_check
        _
      $region50: #{tpu_custom_call.1} parent=5 // pred_check_branch
        %353 = sbr.rel (%p350) target = $region52
      $region51: #{tpu_custom_call.1} parent=5 // pred_region
        %s354 = ssub.s32 %s20, 1
        %s355 = sand.u32 %s71, 1
        %s356 = scalar_lea.sflag [#allocation5], %s355
        %s357 = sand.u32 %s71, 1
        %s358 = smul.addr %s357, 8
        %s359 = scalar_lea.vmem [#allocation4], %s358
        // Predicated region
        $region53: #{tpu_custom_call.1} parent=51 // pred_check
          %p360 = pneg %p84
        $region54: #{tpu_custom_call.1} parent=51 // pred_check_branch
          %362 = sbr.rel (%p360) target = $region56
        $region55: #{tpu_custom_call.1} parent=51 // pred_region
          %363 = dma.done %s356, 128
        $region56: #{tpu_custom_call.1} parent=51 // pred_fallthru
          _
        %p364 = scmp.lt.s32.totalorder %s29, 1
        %s365 = scalar_select %p364, %s29, 1
        %s366 = smul.addr %s365, 8
        %s367 = scalar_lea.vmem %s0, %s366
        %p368 = pneg %p58
        %p369 = pneg %p55
        %s370 = sand.u32 %s71, 1
        %s371 = scalar_lea.sflag [#allocation5], %s370
        %s372 = sand.u32 %s71, 1
        %s373 = smul.addr %s372, 8
        %s374 = scalar_lea.vmem [#allocation4], %s373
        %p375 = pneg %p84
        %p376 = pneg %p81
        %p377 = scmp.lt.s32.totalorder %s30, 1
        %s378 = scalar_select %p377, %s30, 1
        %s379 = smul.addr %s378, 2
        %s380 = smul.addr %s379, 8
        %s381 = scalar_lea.vmem %s2, %s380
        %p382 = pneg %p110
        %p383 = pneg %p107
        %p384 = scmp.lt.s32.totalorder %s30, 1
        %s385 = scalar_select %p384, %s30, 1
        %s386 = smul.addr %s385, 12
        %s387 = smul.addr %s386, 4
        %s388 = scalar_lea.vmem %s3, %s387
        %p389 = pneg %p136
        %p390 = pneg %p133
        %p391 = scmp.lt.s32.totalorder %s30, 1
        %s392 = scalar_select %p391, %s30, 1
        %s393 = smul.addr %s392, 6
        %s394 = smul.addr %s393, 4
        %s395 = scalar_lea.vmem %s4, %s394
        %p396 = pneg %p162
        %p397 = pneg %p159
        %p398 = scmp.lt.s32.totalorder %s30, 1
        %s399 = scalar_select %p398, %s30, 1
        %s400 = smul.addr %s399, 12
        %s401 = smul.addr %s400, 4
        %s402 = scalar_lea.vmem %s5, %s401
        %p403 = pneg %p188
        %p404 = pneg %p185
        %p405 = scmp.lt.s32.totalorder %s30, 1
        %s406 = scalar_select %p405, %s30, 1
        %s407 = smul.addr %s406, 24
        %s408 = smul.addr %s407, 4
        %s409 = scalar_lea.vmem %s6, %s408
        %p410 = pneg %p214
        %p411 = pneg %p211
        %p412 = pneg %p235
        %p413 = pneg %p232
        %p414 = pneg %p261
        %p415 = pneg %p258
        %s416 = sand.u32 %s248, 1
        %s417 = scalar_lea.sflag [#allocation6], %s416
        %s418 = sand.u32 %s248, 1
        %s419 = smul.addr %s418, 8
        %s420 = scalar_lea.vmem [#allocation7], %s419
        %p421 = scmp.lt.s32.totalorder %s29, 1
        %s422 = scalar_select %p421, %s29, 1
        %s423 = smul.addr %s422, 8
        %s424 = scalar_lea.vmem %s0, %s423
        %p425 = scmp.lt.s32.totalorder %s30, 1
        %s426 = scalar_select %p425, %s30, 1
        %s427 = smul.addr %s426, 2
        %s428 = smul.addr %s427, 8
        %s429 = scalar_lea.vmem %s2, %s428
        %p430 = scmp.lt.s32.totalorder %s30, 1
        %s431 = scalar_select %p430, %s30, 1
        %s432 = smul.addr %s431, 12
        %s433 = smul.addr %s432, 4
        %s434 = scalar_lea.vmem %s3, %s433
        %p435 = scmp.lt.s32.totalorder %s30, 1
        %s436 = scalar_select %p435, %s30, 1
        %s437 = smul.addr %s436, 6
        %s438 = smul.addr %s437, 4
        %s439 = scalar_lea.vmem %s4, %s438
        %p440 = scmp.lt.s32.totalorder %s30, 1
        %s441 = scalar_select %p440, %s30, 1
        %s442 = smul.addr %s441, 12
        %s443 = smul.addr %s442, 4
        %s444 = scalar_lea.vmem %s5, %s443
        %p445 = scmp.lt.s32.totalorder %s30, 1
        %s446 = scalar_select %p445, %s30, 1
        %s447 = smul.addr %s446, 24
        %s448 = smul.addr %s447, 4
        %s449 = scalar_lea.vmem %s6, %s448
        %p451 = scmp.eq.s32.totalorder %s30, 0
        // Predicated region
        $region57: #{tpu_custom_call.1} parent=51 // pred_check
          %p452 = pneg %p451
        $region58: #{tpu_custom_call.1} parent=51 // pred_check_branch
          %454 = sbr.rel (%p452) target = $region60
        $region59: #{tpu_custom_call.1} parent=51 // pred_region
          %v455 = vld [vmem:[%s424] sm:$0xff]
          %vm456 = vcmask 392192
          %457 = vst.msk [vmem:[#allocation2] sm:$0xff] %vm456, %v455
        $region60: #{tpu_custom_call.1} parent=51 // pred_fallthru
          _
        %v458 = vld [vmem:[%s429] sm:$0xff]
        %v459 = vld [vmem:[%s429 + $0x8] sm:$0xff]
        %v460 = vld [vmem:[%s359] sm:$0xff]
        %v461 = vld [vmem:[#allocation2] sm:$0xff]
        %v462 = vadd.f32 %v461, %v460
        %vm463 = vcmask 392192
        %v464 = vsel %vm463, %v462, 0.0
        %465 = vadd.xlane.f32.xlu0 %v464
        %v466 = vpop.xlane.xlu0 %465
        %v467 = vrcp.pop 48.0
        %v468 = vmul.f32 %v466, %v467
        %v469 = vsub.f32 %v462, %v468
        %v470 = vmul.f32 %v469, %v469
        %v471 = vsel %vm463, %v470, 0.0
        %472 = vadd.xlane.f32.xlu0 %v471
        %v473 = vpop.xlane.xlu0 %472
        %v474 = vmul.f32 %v473, %v467
        %v475 = vadd.f32 %v474, 1e-05
        %v476 = vrsqrt.pop %v475
        %v477 = vmul.f32 %v469, %v476
        %v478 = vlaneseq
        %v479 = vshrl.u32 %v478, 7
        %v480 = vsub.s32 0, %v479
        %v481 = vrot.slane %v458, %v480
        %v482 = vmul.f32 %v477, %v481
        %v483 = vlaneseq
        %v484 = vshrl.u32 %v483, 7
        %v485 = vsub.s32 1, %v484
        %v486 = vrot.slane %v458, %v485
        %v487 = vadd.f32 %v482, %v486
        %v488 = vld [vmem:[%s434] sm:$0xff]
        %v489 = vld [vmem:[%s434 + $0x8] sm:$0xff]
        %v490 = vld [vmem:[%s434 + $0x10] sm:$0xff]
        %v491 = vld [vmem:[%s434 + $0x18] sm:$0xff]
        %v492 = vld [vmem:[%s434 + $0x20] sm:$0xff]
        %v493 = vld [vmem:[%s434 + $0x28] sm:$0xff]
        %v494 = vpack.c.bf16 %v487, %v487
        %v501 = vunpack.c.l.b16 %v488
        %v502 = vunpack.c.h.b16 %v488
        %v503 = vunpack.c.l.b16 %v489
        %v504 = vunpack.c.h.b16 %v489
        %v505 = vunpack.c.l.b16 %v490
        %v506 = vunpack.c.h.b16 %v490
        %v507 = vunpack.c.l.b16 %v491
        %v508 = vunpack.c.h.b16 %v491
        %v509 = vunpack.c.l.b16 %v492
        %v510 = vunpack.c.h.b16 %v492
        %v511 = vunpack.c.l.b16 %v493
        %v512 = vunpack.c.h.b16 %v493
        %v513 = vpack.c.b16 %v503, %v501
        %v514 = vpack.c.b16 %v504, %v502
        %v515 = vpack.c.b16 %v507, %v505
        %v516 = vpack.c.b16 %v508, %v506
        %v517 = vpack.c.b16 %v511, %v509
        %v518 = vpack.c.b16 %v512, %v510
        %v526 = vsel %vm463, %v494, 0
        %528 = vmatprep.subr.bf16.mxu0 0
        %529 = vmatpush1.bf16.msra.mxu0 0
        %530 = vmatprep.subr.bf16.mxu0 0
        %531 = vmatpush1.bf16.msra.mxu0 0
        %532 = vmatprep.subr.bf16.mxu0 0
        %533 = vmatpush1.bf16.msra.mxu0 0
        %534 = vmatprep.subr.bf16.mxu0 0
        %535 = vmatpush1.bf16.msra.mxu0 0
        %536 = vmatprep.subr.bf16.mxu0 0
        %537 = vmatpush1.bf16.msra.mxu0 0
        %538 = vmatprep.subr.bf16.mxu0 %v518
        %539 = vmatpush1.bf16.msra.mxu0 %v517
        %540 = vmatprep.subr.bf16.mxu0 %v516
        %541 = vmatpush1.bf16.msra.mxu0 %v515
        %542 = vmatprep.subr.bf16.mxu0 %v514
        %543 = vmatpush1.bf16.msra.mxu0 %v513
        %544 = vmatprep.subr.bf16.mxu0 0
        %545 = vmatpush2.bf16.msra.mxu0 0
        %546 = vmatprep.subr.bf16.mxu0 0
        %547 = vmatpush2.bf16.msra.mxu0 0
        %548 = vmatprep.subr.bf16.mxu0 0
        %549 = vmatpush2.bf16.msra.mxu0 0
        %550 = vmatprep.subr.bf16.mxu0 0
        %551 = vmatpush2.bf16.msra.mxu0 0
        %552 = vmatprep.subr.bf16.mxu0 0
        %553 = vmatpush2.bf16.msra.mxu0 0
        %554 = vmatprep.subr.bf16.mxu0 0
        %555 = vmatpush2.bf16.msra.mxu0 0
        %556 = vmatprep.subr.bf16.mxu0 0
        %557 = vmatpush2.bf16.msra.mxu0 0
        %558 = vmatprep.subr.bf16.mxu0 0
        %559 = vmatpush2.bf16.msra.mxu0 0
        %560 = vmatprep.mubr.bf16.mxu0 0
        %561 = vmatmul.mubr.bf16.gmra.mxu0 %v526
        %v562 = vpop.f32.mrf.mxu0
        %v563 = vadd.f32 0.0, %v562
        %v564 = vpop.f32.mrf.mxu0
        %v565 = vadd.f32 0.0, %v564
        %v566 = vpop.f32.mrf.mxu0
        %v567 = vpop.f32.mrf.mxu0
        %568 = vdwg.mxu0
        %v569 = vpack.c.bf16 %v563, %v563
        %571 = vrot.lane.b32.xlu0 %v569, 80
        %v572 = vpop.permute.xlu0 %571
        %vm573 = vcmask 64512
        %v575 = vsel %vm573, %v569, 0
        %v578 = vsel %vm573, %v572, 0
        %580 = vmatprep.subr.bf16.mxu0 0
        %581 = vmatpush1.bf16.xpose.msra.mxu0 0
        %582 = vmatprep.subr.bf16.mxu0 0
        %583 = vmatpush1.bf16.xpose.msra.mxu0 0
        %584 = vmatprep.subr.bf16.mxu0 0
        %585 = vmatpush1.bf16.xpose.msra.mxu0 0
        %586 = vmatprep.subr.bf16.mxu0 0
        %587 = vmatpush1.bf16.xpose.msra.mxu0 0
        %588 = vmatprep.subr.bf16.mxu0 0
        %589 = vmatpush1.bf16.xpose.msra.mxu0 0
        %590 = vmatprep.subr.bf16.mxu0 0
        %591 = vmatpush1.bf16.xpose.msra.mxu0 0
        %592 = vmatprep.subr.bf16.mxu0 0
        %593 = vmatpush1.bf16.xpose.msra.mxu0 0
        %594 = vmatprep.subr.bf16.mxu0 0
        %595 = vmatpush1.bf16.xpose.msra.mxu0 %v578
        %596 = vmatprep.subr.bf16.mxu0 0
        %597 = vmatpush2.bf16.xpose.msra.mxu0 0
        %598 = vmatprep.subr.bf16.mxu0 0
        %599 = vmatpush2.bf16.xpose.msra.mxu0 0
        %600 = vmatprep.subr.bf16.mxu0 0
        %601 = vmatpush2.bf16.xpose.msra.mxu0 0
        %602 = vmatprep.subr.bf16.mxu0 0
        %603 = vmatpush2.bf16.xpose.msra.mxu0 0
        %604 = vmatprep.subr.bf16.mxu0 0
        %605 = vmatpush2.bf16.xpose.msra.mxu0 0
        %606 = vmatprep.subr.bf16.mxu0 0
        %607 = vmatpush2.bf16.xpose.msra.mxu0 0
        %608 = vmatprep.subr.bf16.mxu0 0
        %609 = vmatpush2.bf16.xpose.msra.mxu0 0
        %610 = vmatprep.subr.bf16.mxu0 0
        %611 = vmatpush2.bf16.xpose.msra.mxu0 0
        %612 = vmatprep.mubr.bf16.mxu0 0
        %613 = vmatmul.mubr.bf16.gmra.mxu0 %v575
        %v614 = vpop.f32.mrf.mxu0
        %v615 = vadd.f32 0.0, %v614
        %v616 = vpop.f32.mrf.mxu0
        %v617 = vpop.f32.mrf.mxu0
        %v618 = vpop.f32.mrf.mxu0
        %619 = vdwg.mxu0
        %v620 = vsel %vm573, %v615, -inf
        %621 = vmax.xlane.f32.xlu0 %v620
        %v622 = vpop.xlane.xlu0 %621
        %v623 = vsub.f32 %v615, %v622
        %v624 = vmul.f32 %v623, 1.442695
        %v625 = vpow.pop %v624
        %v626 = vsel %vm573, %v625, 0.0
        %627 = vadd.xlane.f32.xlu0 %v626
        %v628 = vpop.xlane.xlu0 %627
        %v629 = vrcp.pop %v628
        %v630 = vmul.f32 %v625, %v629
        %v631 = vpack.c.bf16 %v630, %v630
        %632 = vrot.lane.b32.xlu0 %v569, 32
        %v633 = vpop.permute.xlu0 %632
        %v635 = vsel %vm573, %v631, 0
        %vm637 = vcmask 1043456
        %v639 = vsel %vm637, %v633, 0
        %641 = vmatprep.subr.bf16.mxu0 0
        %642 = vmatpush1.bf16.msra.mxu0 0
        %643 = vmatprep.subr.bf16.mxu0 0
        %644 = vmatpush1.bf16.msra.mxu0 0
        %645 = vmatprep.subr.bf16.mxu0 0
        %646 = vmatpush1.bf16.msra.mxu0 0
        %647 = vmatprep.subr.bf16.mxu0 0
        %648 = vmatpush1.bf16.msra.mxu0 0
        %649 = vmatprep.subr.bf16.mxu0 0
        %650 = vmatpush1.bf16.msra.mxu0 0
        %651 = vmatprep.subr.bf16.mxu0 0
        %652 = vmatpush1.bf16.msra.mxu0 0
        %653 = vmatprep.subr.bf16.mxu0 0
        %654 = vmatpush1.bf16.msra.mxu0 0
        %655 = vmatprep.subr.bf16.mxu0 0
        %656 = vmatpush1.bf16.msra.mxu0 %v639
        %657 = vmatprep.subr.bf16.mxu0 0
        %658 = vmatpush2.bf16.msra.mxu0 0
        %659 = vmatprep.subr.bf16.mxu0 0
        %660 = vmatpush2.bf16.msra.mxu0 0
        %661 = vmatprep.subr.bf16.mxu0 0
        %662 = vmatpush2.bf16.msra.mxu0 0
        %663 = vmatprep.subr.bf16.mxu0 0
        %664 = vmatpush2.bf16.msra.mxu0 0
        %665 = vmatprep.subr.bf16.mxu0 0
        %666 = vmatpush2.bf16.msra.mxu0 0
        %667 = vmatprep.subr.bf16.mxu0 0
        %668 = vmatpush2.bf16.msra.mxu0 0
        %669 = vmatprep.subr.bf16.mxu0 0
        %670 = vmatpush2.bf16.msra.mxu0 0
        %671 = vmatprep.subr.bf16.mxu0 0
        %672 = vmatpush2.bf16.msra.mxu0 0
        %673 = vmatprep.mubr.bf16.mxu0 0
        %674 = vmatmul.mubr.bf16.gmra.mxu0 %v635
        %v675 = vpop.f32.mrf.mxu0
        %v676 = vadd.f32 0.0, %v675
        %v677 = vpop.f32.mrf.mxu0
        %v678 = vpop.f32.mrf.mxu0
        %v679 = vpop.f32.mrf.mxu0
        %680 = vdwg.mxu0
        %v681 = vpack.c.bf16 %v676, %v676
        %vm682 = vcmask 60416
        %683 = vst.msk [vmem:[#allocation3] sm:$0xf] %vm682, %v681
        %684 = vrot.lane.b32.xlu0 %v569, 120
        %v685 = vpop.permute.xlu0 %684
        %686 = vrot.lane.b32.xlu0 %v569, 72
        %v687 = vpop.permute.xlu0 %686
        %v689 = vsel %vm573, %v685, 0
        %v692 = vsel %vm573, %v687, 0
        %694 = vmatprep.subr.bf16.mxu0 0
        %695 = vmatpush1.bf16.xpose.msra.mxu0 0
        %696 = vmatprep.subr.bf16.mxu0 0
        %697 = vmatpush1.bf16.xpose.msra.mxu0 0
        %698 = vmatprep.subr.bf16.mxu0 0
        %699 = vmatpush1.bf16.xpose.msra.mxu0 0
        %700 = vmatprep.subr.bf16.mxu0 0
        %701 = vmatpush1.bf16.xpose.msra.mxu0 0
        %702 = vmatprep.subr.bf16.mxu0 0
        %703 = vmatpush1.bf16.xpose.msra.mxu0 0
        %704 = vmatprep.subr.bf16.mxu0 0
        %705 = vmatpush1.bf16.xpose.msra.mxu0 0
        %706 = vmatprep.subr.bf16.mxu0 0
        %707 = vmatpush1.bf16.xpose.msra.mxu0 0
        %708 = vmatprep.subr.bf16.mxu0 0
        %709 = vmatpush1.bf16.xpose.msra.mxu0 %v692
        %710 = vmatprep.subr.bf16.mxu0 0
        %711 = vmatpush2.bf16.xpose.msra.mxu0 0
        %712 = vmatprep.subr.bf16.mxu0 0
        %713 = vmatpush2.bf16.xpose.msra.mxu0 0
        %714 = vmatprep.subr.bf16.mxu0 0
        %715 = vmatpush2.bf16.xpose.msra.mxu0 0
        %716 = vmatprep.subr.bf16.mxu0 0
        %717 = vmatpush2.bf16.xpose.msra.mxu0 0
        %718 = vmatprep.subr.bf16.mxu0 0
        %719 = vmatpush2.bf16.xpose.msra.mxu0 0
        %720 = vmatprep.subr.bf16.mxu0 0
        %721 = vmatpush2.bf16.xpose.msra.mxu0 0
        %722 = vmatprep.subr.bf16.mxu0 0
        %723 = vmatpush2.bf16.xpose.msra.mxu0 0
        %724 = vmatprep.subr.bf16.mxu0 0
        %725 = vmatpush2.bf16.xpose.msra.mxu0 0
        %726 = vmatprep.mubr.bf16.mxu0 0
        %727 = vmatmul.mubr.bf16.gmra.mxu0 %v689
        %v728 = vpop.f32.mrf.mxu0
        %v729 = vadd.f32 0.0, %v728
        %v730 = vpop.f32.mrf.mxu0
        %v731 = vpop.f32.mrf.mxu0
        %v732 = vpop.f32.mrf.mxu0
        %733 = vdwg.mxu0
        %v734 = vsel %vm573, %v729, -inf
        %735 = vmax.xlane.f32.xlu0 %v734
        %v736 = vpop.xlane.xlu0 %735
        %v737 = vsub.f32 %v729, %v736
        %v738 = vmul.f32 %v737, 1.442695
        %v739 = vpow.pop %v738
        %v740 = vsel %vm573, %v739, 0.0
        %741 = vadd.xlane.f32.xlu0 %v740
        %v742 = vpop.xlane.xlu0 %741
        %v743 = vrcp.pop %v742
        %v744 = vmul.f32 %v739, %v743
        %v745 = vpack.c.bf16 %v744, %v744
        %746 = vrot.lane.b32.xlu0 %v569, 24
        %v747 = vpop.permute.xlu0 %746
        %v749 = vsel %vm573, %v745, 0
        %v752 = vsel %vm637, %v747, 0
        %754 = vmatprep.subr.bf16.mxu0 0
        %755 = vmatpush1.bf16.msra.mxu0 0
        %756 = vmatprep.subr.bf16.mxu0 0
        %757 = vmatpush1.bf16.msra.mxu0 0
        %758 = vmatprep.subr.bf16.mxu0 0
        %759 = vmatpush1.bf16.msra.mxu0 0
        %760 = vmatprep.subr.bf16.mxu0 0
        %761 = vmatpush1.bf16.msra.mxu0 0
        %762 = vmatprep.subr.bf16.mxu0 0
        %763 = vmatpush1.bf16.msra.mxu0 0
        %764 = vmatprep.subr.bf16.mxu0 0
        %765 = vmatpush1.bf16.msra.mxu0 0
        %766 = vmatprep.subr.bf16.mxu0 0
        %767 = vmatpush1.bf16.msra.mxu0 0
        %768 = vmatprep.subr.bf16.mxu0 0
        %769 = vmatpush1.bf16.msra.mxu0 %v752
        %770 = vmatprep.subr.bf16.mxu0 0
        %771 = vmatpush2.bf16.msra.mxu0 0
        %772 = vmatprep.subr.bf16.mxu0 0
        %773 = vmatpush2.bf16.msra.mxu0 0
        %774 = vmatprep.subr.bf16.mxu0 0
        %775 = vmatpush2.bf16.msra.mxu0 0
        %776 = vmatprep.subr.bf16.mxu0 0
        %777 = vmatpush2.bf16.msra.mxu0 0
        %778 = vmatprep.subr.bf16.mxu0 0
        %779 = vmatpush2.bf16.msra.mxu0 0
        %780 = vmatprep.subr.bf16.mxu0 0
        %781 = vmatpush2.bf16.msra.mxu0 0
        %782 = vmatprep.subr.bf16.mxu0 0
        %783 = vmatpush2.bf16.msra.mxu0 0
        %784 = vmatprep.subr.bf16.mxu0 0
        %785 = vmatpush2.bf16.msra.mxu0 0
        %786 = vmatprep.mubr.bf16.mxu0 0
        %787 = vmatmul.mubr.bf16.gmra.mxu0 %v749
        %v788 = vpop.f32.mrf.mxu0
        %v789 = vadd.f32 0.0, %v788
        %v790 = vpop.f32.mrf.mxu0
        %v791 = vpop.f32.mrf.mxu0
        %v792 = vpop.f32.mrf.mxu0
        %793 = vdwg.mxu0
        %v794 = vpack.c.bf16 %v789, %v789
        %v796 = vunpack.c.l.b16 %v794
        %v797 = vpack.c.b16 %v796, %v796
        %798 = vrot.lane.b32.xlu0 %v797, 8
        %v799 = vpop.permute.xlu0 %798
        %vm801 = vcmask 126016
        %802 = vst.msk [vmem:[#allocation3] sm:$0xf] %vm801, %v799
        %803 = vrot.lane.b32.xlu0 %v569, 112
        %v804 = vpop.permute.xlu0 %803
        %805 = vrot.lane.b32.xlu0 %v569, 64
        %v806 = vpop.permute.xlu0 %805
        %v808 = vsel %vm573, %v804, 0
        %v811 = vsel %vm573, %v806, 0
        %813 = vmatprep.subr.bf16.mxu0 0
        %814 = vmatpush1.bf16.xpose.msra.mxu0 0
        %815 = vmatprep.subr.bf16.mxu0 0
        %816 = vmatpush1.bf16.xpose.msra.mxu0 0
        %817 = vmatprep.subr.bf16.mxu0 0
        %818 = vmatpush1.bf16.xpose.msra.mxu0 0
        %819 = vmatprep.subr.bf16.mxu0 0
        %820 = vmatpush1.bf16.xpose.msra.mxu0 0
        %821 = vmatprep.subr.bf16.mxu0 0
        %822 = vmatpush1.bf16.xpose.msra.mxu0 0
        %823 = vmatprep.subr.bf16.mxu0 0
        %824 = vmatpush1.bf16.xpose.msra.mxu0 0
        %825 = vmatprep.subr.bf16.mxu0 0
        %826 = vmatpush1.bf16.xpose.msra.mxu0 0
        %827 = vmatprep.subr.bf16.mxu0 0
        %828 = vmatpush1.bf16.xpose.msra.mxu0 %v811
        %829 = vmatprep.subr.bf16.mxu0 0
        %830 = vmatpush2.bf16.xpose.msra.mxu0 0
        %831 = vmatprep.subr.bf16.mxu0 0
        %832 = vmatpush2.bf16.xpose.msra.mxu0 0
        %833 = vmatprep.subr.bf16.mxu0 0
        %834 = vmatpush2.bf16.xpose.msra.mxu0 0
        %835 = vmatprep.subr.bf16.mxu0 0
        %836 = vmatpush2.bf16.xpose.msra.mxu0 0
        %837 = vmatprep.subr.bf16.mxu0 0
        %838 = vmatpush2.bf16.xpose.msra.mxu0 0
        %839 = vmatprep.subr.bf16.mxu0 0
        %840 = vmatpush2.bf16.xpose.msra.mxu0 0
        %841 = vmatprep.subr.bf16.mxu0 0
        %842 = vmatpush2.bf16.xpose.msra.mxu0 0
        %843 = vmatprep.subr.bf16.mxu0 0
        %844 = vmatpush2.bf16.xpose.msra.mxu0 0
        %845 = vmatprep.mubr.bf16.mxu0 0
        %846 = vmatmul.mubr.bf16.gmra.mxu0 %v808
        %v847 = vpop.f32.mrf.mxu0
        %v848 = vadd.f32 0.0, %v847
        %v849 = vpop.f32.mrf.mxu0
        %v850 = vpop.f32.mrf.mxu0
        %v851 = vpop.f32.mrf.mxu0
        %852 = vdwg.mxu0
        %v853 = vsel %vm573, %v848, -inf
        %854 = vmax.xlane.f32.xlu0 %v853
        %v855 = vpop.xlane.xlu0 %854
        %v856 = vsub.f32 %v848, %v855
        %v857 = vmul.f32 %v856, 1.442695
        %v858 = vpow.pop %v857
        %v859 = vsel %vm573, %v858, 0.0
        %860 = vadd.xlane.f32.xlu0 %v859
        %v861 = vpop.xlane.xlu0 %860
        %v862 = vrcp.pop %v861
        %v863 = vmul.f32 %v858, %v862
        %v864 = vpack.c.bf16 %v863, %v863
        %865 = vrot.lane.b32.xlu0 %v569, 16
        %v866 = vpop.permute.xlu0 %865
        %v868 = vsel %vm573, %v864, 0
        %v871 = vsel %vm637, %v866, 0
        %873 = vmatprep.subr.bf16.mxu0 0
        %874 = vmatpush1.bf16.msra.mxu0 0
        %875 = vmatprep.subr.bf16.mxu0 0
        %876 = vmatpush1.bf16.msra.mxu0 0
        %877 = vmatprep.subr.bf16.mxu0 0
        %878 = vmatpush1.bf16.msra.mxu0 0
        %879 = vmatprep.subr.bf16.mxu0 0
        %880 = vmatpush1.bf16.msra.mxu0 0
        %881 = vmatprep.subr.bf16.mxu0 0
        %882 = vmatpush1.bf16.msra.mxu0 0
        %883 = vmatprep.subr.bf16.mxu0 0
        %884 = vmatpush1.bf16.msra.mxu0 0
        %885 = vmatprep.subr.bf16.mxu0 0
        %886 = vmatpush1.bf16.msra.mxu0 0
        %887 = vmatprep.subr.bf16.mxu0 0
        %888 = vmatpush1.bf16.msra.mxu0 %v871
        %889 = vmatprep.subr.bf16.mxu0 0
        %890 = vmatpush2.bf16.msra.mxu0 0
        %891 = vmatprep.subr.bf16.mxu0 0
        %892 = vmatpush2.bf16.msra.mxu0 0
        %893 = vmatprep.subr.bf16.mxu0 0
        %894 = vmatpush2.bf16.msra.mxu0 0
        %895 = vmatprep.subr.bf16.mxu0 0
        %896 = vmatpush2.bf16.msra.mxu0 0
        %897 = vmatprep.subr.bf16.mxu0 0
        %898 = vmatpush2.bf16.msra.mxu0 0
        %899 = vmatprep.subr.bf16.mxu0 0
        %900 = vmatpush2.bf16.msra.mxu0 0
        %901 = vmatprep.subr.bf16.mxu0 0
        %902 = vmatpush2.bf16.msra.mxu0 0
        %903 = vmatprep.subr.bf16.mxu0 0
        %904 = vmatpush2.bf16.msra.mxu0 0
        %905 = vmatprep.mubr.bf16.mxu0 0
        %906 = vmatmul.mubr.bf16.gmra.mxu0 %v868
        %v907 = vpop.f32.mrf.mxu0
        %v908 = vadd.f32 0.0, %v907
        %v909 = vpop.f32.mrf.mxu0
        %v910 = vpop.f32.mrf.mxu0
        %v911 = vpop.f32.mrf.mxu0
        %912 = vdwg.mxu0
        %v913 = vpack.c.bf16 %v908, %v908
        %v915 = vunpack.c.l.b16 %v913
        %v916 = vpack.c.b16 %v915, %v915
        %917 = vrot.lane.b32.xlu0 %v916, 16
        %v918 = vpop.permute.xlu0 %917
        %vm920 = vcmask 191616
        %921 = vst.msk [vmem:[#allocation3] sm:$0xf] %vm920, %v918
        %922 = vrot.lane.b32.xlu0 %v569, 104
        %v923 = vpop.permute.xlu0 %922
        %924 = vrot.lane.b32.xlu0 %v569, 56
        %v925 = vpop.permute.xlu0 %924
        %v927 = vsel %vm573, %v923, 0
        %v930 = vsel %vm573, %v925, 0
        %932 = vmatprep.subr.bf16.mxu0 0
        %933 = vmatpush1.bf16.xpose.msra.mxu0 0
        %934 = vmatprep.subr.bf16.mxu0 0
        %935 = vmatpush1.bf16.xpose.msra.mxu0 0
        %936 = vmatprep.subr.bf16.mxu0 0
        %937 = vmatpush1.bf16.xpose.msra.mxu0 0
        %938 = vmatprep.subr.bf16.mxu0 0
        %939 = vmatpush1.bf16.xpose.msra.mxu0 0
        %940 = vmatprep.subr.bf16.mxu0 0
        %941 = vmatpush1.bf16.xpose.msra.mxu0 0
        %942 = vmatprep.subr.bf16.mxu0 0
        %943 = vmatpush1.bf16.xpose.msra.mxu0 0
        %944 = vmatprep.subr.bf16.mxu0 0
        %945 = vmatpush1.bf16.xpose.msra.mxu0 0
        %946 = vmatprep.subr.bf16.mxu0 0
        %947 = vmatpush1.bf16.xpose.msra.mxu0 %v930
        %948 = vmatprep.subr.bf16.mxu0 0
        %949 = vmatpush2.bf16.xpose.msra.mxu0 0
        %950 = vmatprep.subr.bf16.mxu0 0
        %951 = vmatpush2.bf16.xpose.msra.mxu0 0
        %952 = vmatprep.subr.bf16.mxu0 0
        %953 = vmatpush2.bf16.xpose.msra.mxu0 0
        %954 = vmatprep.subr.bf16.mxu0 0
        %955 = vmatpush2.bf16.xpose.msra.mxu0 0
        %956 = vmatprep.subr.bf16.mxu0 0
        %957 = vmatpush2.bf16.xpose.msra.mxu0 0
        %958 = vmatprep.subr.bf16.mxu0 0
        %959 = vmatpush2.bf16.xpose.msra.mxu0 0
        %960 = vmatprep.subr.bf16.mxu0 0
        %961 = vmatpush2.bf16.xpose.msra.mxu0 0
        %962 = vmatprep.subr.bf16.mxu0 0
        %963 = vmatpush2.bf16.xpose.msra.mxu0 0
        %964 = vmatprep.mubr.bf16.mxu0 0
        %965 = vmatmul.mubr.bf16.gmra.mxu0 %v927
        %v966 = vpop.f32.mrf.mxu0
        %v967 = vadd.f32 0.0, %v966
        %v968 = vpop.f32.mrf.mxu0
        %v969 = vpop.f32.mrf.mxu0
        %v970 = vpop.f32.mrf.mxu0
        %971 = vdwg.mxu0
        %v972 = vsel %vm573, %v967, -inf
        %973 = vmax.xlane.f32.xlu0 %v972
        %v974 = vpop.xlane.xlu0 %973
        %v975 = vsub.f32 %v967, %v974
        %v976 = vmul.f32 %v975, 1.442695
        %v977 = vpow.pop %v976
        %v978 = vsel %vm573, %v977, 0.0
        %979 = vadd.xlane.f32.xlu0 %v978
        %v980 = vpop.xlane.xlu0 %979
        %v981 = vrcp.pop %v980
        %v982 = vmul.f32 %v977, %v981
        %v983 = vpack.c.bf16 %v982, %v982
        %984 = vrot.lane.b32.xlu0 %v569, 8
        %v985 = vpop.permute.xlu0 %984
        %v987 = vsel %vm573, %v983, 0
        %v990 = vsel %vm637, %v985, 0
        %992 = vmatprep.subr.bf16.mxu0 0
        %993 = vmatpush1.bf16.msra.mxu0 0
        %994 = vmatprep.subr.bf16.mxu0 0
        %995 = vmatpush1.bf16.msra.mxu0 0
        %996 = vmatprep.subr.bf16.mxu0 0
        %997 = vmatpush1.bf16.msra.mxu0 0
        %998 = vmatprep.subr.bf16.mxu0 0
        %999 = vmatpush1.bf16.msra.mxu0 0
        %1000 = vmatprep.subr.bf16.mxu0 0
        %1001 = vmatpush1.bf16.msra.mxu0 0
        %1002 = vmatprep.subr.bf16.mxu0 0
        %1003 = vmatpush1.bf16.msra.mxu0 0
        %1004 = vmatprep.subr.bf16.mxu0 0
        %1005 = vmatpush1.bf16.msra.mxu0 0
        %1006 = vmatprep.subr.bf16.mxu0 0
        %1007 = vmatpush1.bf16.msra.mxu0 %v990
        %1008 = vmatprep.subr.bf16.mxu0 0
        %1009 = vmatpush2.bf16.msra.mxu0 0
        %1010 = vmatprep.subr.bf16.mxu0 0
        %1011 = vmatpush2.bf16.msra.mxu0 0
        %1012 = vmatprep.subr.bf16.mxu0 0
        %1013 = vmatpush2.bf16.msra.mxu0 0
        %1014 = vmatprep.subr.bf16.mxu0 0
        %1015 = vmatpush2.bf16.msra.mxu0 0
        %1016 = vmatprep.subr.bf16.mxu0 0
        %1017 = vmatpush2.bf16.msra.mxu0 0
        %1018 = vmatprep.subr.bf16.mxu0 0
        %1019 = vmatpush2.bf16.msra.mxu0 0
        %1020 = vmatprep.subr.bf16.mxu0 0
        %1021 = vmatpush2.bf16.msra.mxu0 0
        %1022 = vmatprep.subr.bf16.mxu0 0
        %1023 = vmatpush2.bf16.msra.mxu0 0
        %1024 = vmatprep.mubr.bf16.mxu0 0
        %1025 = vmatmul.mubr.bf16.gmra.mxu0 %v987
        %v1026 = vpop.f32.mrf.mxu0
        %v1027 = vadd.f32 0.0, %v1026
        %v1028 = vpop.f32.mrf.mxu0
        %v1029 = vpop.f32.mrf.mxu0
        %v1030 = vpop.f32.mrf.mxu0
        %1031 = vdwg.mxu0
        %v1032 = vpack.c.bf16 %v1027, %v1027
        %v1034 = vunpack.c.l.b16 %v1032
        %v1035 = vpack.c.b16 %v1034, %v1034
        %1036 = vrot.lane.b32.xlu0 %v1035, 24
        %v1037 = vpop.permute.xlu0 %1036
        %vm1039 = vcmask 257216
        %1040 = vst.msk [vmem:[#allocation3] sm:$0xf] %vm1039, %v1037
        %1041 = vrot.lane.b32.xlu0 %v569, 96
        %v1042 = vpop.permute.xlu0 %1041
        %1043 = vrot.lane.b32.xlu0 %v569, 48
        %v1044 = vpop.permute.xlu0 %1043
        %v1046 = vsel %vm573, %v1042, 0
        %v1049 = vsel %vm573, %v1044, 0
        %1051 = vmatprep.subr.bf16.mxu0 0
        %1052 = vmatpush1.bf16.xpose.msra.mxu0 0
        %1053 = vmatprep.subr.bf16.mxu0 0
        %1054 = vmatpush1.bf16.xpose.msra.mxu0 0
        %1055 = vmatprep.subr.bf16.mxu0 0
        %1056 = vmatpush1.bf16.xpose.msra.mxu0 0
        %1057 = vmatprep.subr.bf16.mxu0 0
        %1058 = vmatpush1.bf16.xpose.msra.mxu0 0
        %1059 = vmatprep.subr.bf16.mxu0 0
        %1060 = vmatpush1.bf16.xpose.msra.mxu0 0
        %1061 = vmatprep.subr.bf16.mxu0 0
        %1062 = vmatpush1.bf16.xpose.msra.mxu0 0
        %1063 = vmatprep.subr.bf16.mxu0 0
        %1064 = vmatpush1.bf16.xpose.msra.mxu0 0
        %1065 = vmatprep.subr.bf16.mxu0 0
        %1066 = vmatpush1.bf16.xpose.msra.mxu0 %v1049
        %1067 = vmatprep.subr.bf16.mxu0 0
        %1068 = vmatpush2.bf16.xpose.msra.mxu0 0
        %1069 = vmatprep.subr.bf16.mxu0 0
        %1070 = vmatpush2.bf16.xpose.msra.mxu0 0
        %1071 = vmatprep.subr.bf16.mxu0 0
        %1072 = vmatpush2.bf16.xpose.msra.mxu0 0
        %1073 = vmatprep.subr.bf16.mxu0 0
        %1074 = vmatpush2.bf16.xpose.msra.mxu0 0
        %1075 = vmatprep.subr.bf16.mxu0 0
        %1076 = vmatpush2.bf16.xpose.msra.mxu0 0
        %1077 = vmatprep.subr.bf16.mxu0 0
        %1078 = vmatpush2.bf16.xpose.msra.mxu0 0
        %1079 = vmatprep.subr.bf16.mxu0 0
        %1080 = vmatpush2.bf16.xpose.msra.mxu0 0
        %1081 = vmatprep.subr.bf16.mxu0 0
        %1082 = vmatpush2.bf16.xpose.msra.mxu0 0
        %1083 = vmatprep.mubr.bf16.mxu0 0
        %1084 = vmatmul.mubr.bf16.gmra.mxu0 %v1046
        %v1085 = vpop.f32.mrf.mxu0
        %v1086 = vadd.f32 0.0, %v1085
        %v1087 = vpop.f32.mrf.mxu0
        %v1088 = vpop.f32.mrf.mxu0
        %v1089 = vpop.f32.mrf.mxu0
        %1090 = vdwg.mxu0
        %v1091 = vsel %vm573, %v1086, -inf
        %1092 = vmax.xlane.f32.xlu0 %v1091
        %v1093 = vpop.xlane.xlu0 %1092
        %v1094 = vsub.f32 %v1086, %v1093
        %v1095 = vmul.f32 %v1094, 1.442695
        %v1096 = vpow.pop %v1095
        %v1097 = vsel %vm573, %v1096, 0.0
        %1098 = vadd.xlane.f32.xlu0 %v1097
        %v1099 = vpop.xlane.xlu0 %1098
        %v1100 = vrcp.pop %v1099
        %v1101 = vmul.f32 %v1096, %v1100
        %v1102 = vpack.c.bf16 %v1101, %v1101
        %v1103 = vpack.c.bf16 %v565, %v565
        %v1105 = vsel %vm573, %v1102, 0
        %v1108 = vsel %vm637, %v1103, 0
        %1110 = vmatprep.subr.bf16.mxu0 0
        %1111 = vmatpush1.bf16.msra.mxu0 0
        %1112 = vmatprep.subr.bf16.mxu0 0
        %1113 = vmatpush1.bf16.msra.mxu0 0
        %1114 = vmatprep.subr.bf16.mxu0 0
        %1115 = vmatpush1.bf16.msra.mxu0 0
        %1116 = vmatprep.subr.bf16.mxu0 0
        %1117 = vmatpush1.bf16.msra.mxu0 0
        %1118 = vmatprep.subr.bf16.mxu0 0
        %1119 = vmatpush1.bf16.msra.mxu0 0
        %1120 = vmatprep.subr.bf16.mxu0 0
        %1121 = vmatpush1.bf16.msra.mxu0 0
        %1122 = vmatprep.subr.bf16.mxu0 0
        %1123 = vmatpush1.bf16.msra.mxu0 0
        %1124 = vmatprep.subr.bf16.mxu0 0
        %1125 = vmatpush1.bf16.msra.mxu0 %v1108
        %1126 = vmatprep.subr.bf16.mxu0 0
        %1127 = vmatpush2.bf16.msra.mxu0 0
        %1128 = vmatprep.subr.bf16.mxu0 0
        %1129 = vmatpush2.bf16.msra.mxu0 0
        %1130 = vmatprep.subr.bf16.mxu0 0
        %1131 = vmatpush2.bf16.msra.mxu0 0
        %1132 = vmatprep.subr.bf16.mxu0 0
        %1133 = vmatpush2.bf16.msra.mxu0 0
        %1134 = vmatprep.subr.bf16.mxu0 0
        %1135 = vmatpush2.bf16.msra.mxu0 0
        %1136 = vmatprep.subr.bf16.mxu0 0
        %1137 = vmatpush2.bf16.msra.mxu0 0
        %1138 = vmatprep.subr.bf16.mxu0 0
        %1139 = vmatpush2.bf16.msra.mxu0 0
        %1140 = vmatprep.subr.bf16.mxu0 0
        %1141 = vmatpush2.bf16.msra.mxu0 0
        %1142 = vmatprep.mubr.bf16.mxu0 0
        %1143 = vmatmul.mubr.bf16.gmra.mxu0 %v1105
        %v1144 = vpop.f32.mrf.mxu0
        %v1145 = vadd.f32 0.0, %v1144
        %v1146 = vpop.f32.mrf.mxu0
        %v1147 = vpop.f32.mrf.mxu0
        %v1148 = vpop.f32.mrf.mxu0
        %1149 = vdwg.mxu0
        %v1150 = vpack.c.bf16 %v1145, %v1145
        %v1152 = vunpack.c.l.b16 %v1150
        %v1153 = vpack.c.b16 %v1152, %v1152
        %1154 = vrot.lane.b32.xlu0 %v1153, 32
        %v1155 = vpop.permute.xlu0 %1154
        %vm1157 = vcmask 322816
        %1158 = vst.msk [vmem:[#allocation3] sm:$0xf] %vm1157, %v1155
        %1159 = vrot.lane.b32.xlu0 %v569, 88
        %v1160 = vpop.permute.xlu0 %1159
        %1161 = vrot.lane.b32.xlu0 %v569, 40
        %v1162 = vpop.permute.xlu0 %1161
        %v1164 = vsel %vm573, %v1160, 0
        %v1167 = vsel %vm573, %v1162, 0
        %1169 = vmatprep.subr.bf16.mxu0 0
        %1170 = vmatpush1.bf16.xpose.msra.mxu0 0
        %1171 = vmatprep.subr.bf16.mxu0 0
        %1172 = vmatpush1.bf16.xpose.msra.mxu0 0
        %1173 = vmatprep.subr.bf16.mxu0 0
        %1174 = vmatpush1.bf16.xpose.msra.mxu0 0
        %1175 = vmatprep.subr.bf16.mxu0 0
        %1176 = vmatpush1.bf16.xpose.msra.mxu0 0
        %1177 = vmatprep.subr.bf16.mxu0 0
        %1178 = vmatpush1.bf16.xpose.msra.mxu0 0
        %1179 = vmatprep.subr.bf16.mxu0 0
        %1180 = vmatpush1.bf16.xpose.msra.mxu0 0
        %1181 = vmatprep.subr.bf16.mxu0 0
        %1182 = vmatpush1.bf16.xpose.msra.mxu0 0
        %1183 = vmatprep.subr.bf16.mxu0 0
        %1184 = vmatpush1.bf16.xpose.msra.mxu0 %v1167
        %1185 = vmatprep.subr.bf16.mxu0 0
        %1186 = vmatpush2.bf16.xpose.msra.mxu0 0
        %1187 = vmatprep.subr.bf16.mxu0 0
        %1188 = vmatpush2.bf16.xpose.msra.mxu0 0
        %1189 = vmatprep.subr.bf16.mxu0 0
        %1190 = vmatpush2.bf16.xpose.msra.mxu0 0
        %1191 = vmatprep.subr.bf16.mxu0 0
        %1192 = vmatpush2.bf16.xpose.msra.mxu0 0
        %1193 = vmatprep.subr.bf16.mxu0 0
        %1194 = vmatpush2.bf16.xpose.msra.mxu0 0
        %1195 = vmatprep.subr.bf16.mxu0 0
        %1196 = vmatpush2.bf16.xpose.msra.mxu0 0
        %1197 = vmatprep.subr.bf16.mxu0 0
        %1198 = vmatpush2.bf16.xpose.msra.mxu0 0
        %1199 = vmatprep.subr.bf16.mxu0 0
        %1200 = vmatpush2.bf16.xpose.msra.mxu0 0
        %1201 = vmatprep.mubr.bf16.mxu0 0
        %1202 = vmatmul.mubr.bf16.gmra.mxu0 %v1164
        %v1203 = vpop.f32.mrf.mxu0
        %v1204 = vadd.f32 0.0, %v1203
        %v1205 = vpop.f32.mrf.mxu0
        %v1206 = vpop.f32.mrf.mxu0
        %v1207 = vpop.f32.mrf.mxu0
        %1208 = vdwg.mxu0
        %v1209 = vsel %vm573, %v1204, -inf
        %1210 = vmax.xlane.f32.xlu0 %v1209
        %v1211 = vpop.xlane.xlu0 %1210
        %v1212 = vsub.f32 %v1204, %v1211
        %v1213 = vmul.f32 %v1212, 1.442695
        %v1214 = vpow.pop %v1213
        %v1215 = vsel %vm573, %v1214, 0.0
        %1216 = vadd.xlane.f32.xlu0 %v1215
        %v1217 = vpop.xlane.xlu0 %1216
        %v1218 = vrcp.pop %v1217
        %v1219 = vmul.f32 %v1214, %v1218
        %v1220 = vpack.c.bf16 %v1219, %v1219
        %1222 = vrot.lane.b32.xlu0 %v1103, 120
        %v1223 = vpop.permute.xlu0 %1222
        %v1225 = vsel %vm573, %v1220, 0
        %v1228 = vsel %vm637, %v1223, 0
        %1230 = vmatprep.subr.bf16.mxu0 0
        %1231 = vmatpush1.bf16.msra.mxu0 0
        %1232 = vmatprep.subr.bf16.mxu0 0
        %1233 = vmatpush1.bf16.msra.mxu0 0
        %1234 = vmatprep.subr.bf16.mxu0 0
        %1235 = vmatpush1.bf16.msra.mxu0 0
        %1236 = vmatprep.subr.bf16.mxu0 0
        %1237 = vmatpush1.bf16.msra.mxu0 0
        %1238 = vmatprep.subr.bf16.mxu0 0
        %1239 = vmatpush1.bf16.msra.mxu0 0
        %1240 = vmatprep.subr.bf16.mxu0 0
        %1241 = vmatpush1.bf16.msra.mxu0 0
        %1242 = vmatprep.subr.bf16.mxu0 0
        %1243 = vmatpush1.bf16.msra.mxu0 0
        %1244 = vmatprep.subr.bf16.mxu0 0
        %1245 = vmatpush1.bf16.msra.mxu0 %v1228
        %1246 = vmatprep.subr.bf16.mxu0 0
        %1247 = vmatpush2.bf16.msra.mxu0 0
        %1248 = vmatprep.subr.bf16.mxu0 0
        %1249 = vmatpush2.bf16.msra.mxu0 0
        %1250 = vmatprep.subr.bf16.mxu0 0
        %1251 = vmatpush2.bf16.msra.mxu0 0
        %1252 = vmatprep.subr.bf16.mxu0 0
        %1253 = vmatpush2.bf16.msra.mxu0 0
        %1254 = vmatprep.subr.bf16.mxu0 0
        %1255 = vmatpush2.bf16.msra.mxu0 0
        %1256 = vmatprep.subr.bf16.mxu0 0
        %1257 = vmatpush2.bf16.msra.mxu0 0
        %1258 = vmatprep.subr.bf16.mxu0 0
        %1259 = vmatpush2.bf16.msra.mxu0 0
        %1260 = vmatprep.subr.bf16.mxu0 0
        %1261 = vmatpush2.bf16.msra.mxu0 0
        %1262 = vmatprep.mubr.bf16.mxu0 0
        %1263 = vmatmul.mubr.bf16.gmra.mxu0 %v1225
        %v1264 = vpop.f32.mrf.mxu0
        %v1265 = vadd.f32 0.0, %v1264
        %v1266 = vpop.f32.mrf.mxu0
        %v1267 = vpop.f32.mrf.mxu0
        %v1268 = vpop.f32.mrf.mxu0
        %1269 = vdwg.mxu0
        %v1270 = vpack.c.bf16 %v1265, %v1265
        %v1272 = vunpack.c.l.b16 %v1270
        %v1273 = vpack.c.b16 %v1272, %v1272
        %1274 = vrot.lane.b32.xlu0 %v1273, 40
        %v1275 = vpop.permute.xlu0 %1274
        %vm1277 = vcmask 388416
        %1278 = vst.msk [vmem:[#allocation3] sm:$0xf] %vm1277, %v1275
        %v1279 = vld [vmem:[#allocation3] sm:$0xf]
        %v1280 = vld [vmem:[%s439] sm:$0xf]
        %v1281 = vld [vmem:[%s439 + $0x4] sm:$0xf]
        %v1282 = vld [vmem:[%s439 + $0x8] sm:$0xf]
        %v1283 = vld [vmem:[%s439 + $0xc] sm:$0xf]
        %v1284 = vld [vmem:[%s439 + $0x10] sm:$0xf]
        %v1285 = vld [vmem:[%s439 + $0x14] sm:$0xf]
        %v1286 = vlaneseq
        %v1287 = vshrl.u32 %v1286, 7
        %v1288 = vsub.s32 4, %v1287
        %v1289 = vrot.slane %v458, %v1288
        %v1296 = vunpack.c.l.b16 %v1280
        %v1297 = vunpack.c.l.b16 %v1281
        %v1298 = vunpack.c.l.b16 %v1282
        %v1299 = vunpack.c.l.b16 %v1283
        %v1300 = vunpack.c.l.b16 %v1284
        %v1301 = vunpack.c.l.b16 %v1285
        %v1302 = vpack.c.b16 %v1297, %v1296
        %v1303 = vpack.c.b16 %v1299, %v1298
        %v1304 = vpack.c.b16 %v1301, %v1300
        %v1309 = vsel %vm463, %v1279, 0
        %1311 = vmatprep.subr.bf16.mxu0 0
        %1312 = vmatpush1.bf16.msra.mxu0 0
        %1313 = vmatprep.subr.bf16.mxu0 0
        %1314 = vmatpush1.bf16.msra.mxu0 0
        %1315 = vmatprep.subr.bf16.mxu0 0
        %1316 = vmatpush1.bf16.msra.mxu0 0
        %1317 = vmatprep.subr.bf16.mxu0 0
        %1318 = vmatpush1.bf16.msra.mxu0 0
        %1319 = vmatprep.subr.bf16.mxu0 0
        %1320 = vmatpush1.bf16.msra.mxu0 0
        %1321 = vmatprep.subr.bf16.mxu0 0
        %1322 = vmatpush1.bf16.msra.mxu0 %v1304
        %1323 = vmatprep.subr.bf16.mxu0 0
        %1324 = vmatpush1.bf16.msra.mxu0 %v1303
        %1325 = vmatprep.subr.bf16.mxu0 0
        %1326 = vmatpush1.bf16.msra.mxu0 %v1302
        %1327 = vmatprep.subr.bf16.mxu0 0
        %1328 = vmatpush2.bf16.msra.mxu0 0
        %1329 = vmatprep.subr.bf16.mxu0 0
        %1330 = vmatpush2.bf16.msra.mxu0 0
        %1331 = vmatprep.subr.bf16.mxu0 0
        %1332 = vmatpush2.bf16.msra.mxu0 0
        %1333 = vmatprep.subr.bf16.mxu0 0
        %1334 = vmatpush2.bf16.msra.mxu0 0
        %1335 = vmatprep.subr.bf16.mxu0 0
        %1336 = vmatpush2.bf16.msra.mxu0 0
        %1337 = vmatprep.subr.bf16.mxu0 0
        %1338 = vmatpush2.bf16.msra.mxu0 0
        %1339 = vmatprep.subr.bf16.mxu0 0
        %1340 = vmatpush2.bf16.msra.mxu0 0
        %1341 = vmatprep.subr.bf16.mxu0 0
        %1342 = vmatpush2.bf16.msra.mxu0 0
        %1343 = vmatprep.mubr.bf16.mxu0 0
        %1344 = vmatmul.mubr.bf16.gmra.mxu0 %v1309
        %v1345 = vpop.f32.mrf.mxu0
        %v1346 = vadd.f32 %v1289, %v1345
        %v1347 = vpop.f32.mrf.mxu0
        %v1348 = vpop.f32.mrf.mxu0
        %v1349 = vpop.f32.mrf.mxu0
        %1350 = vdwg.mxu0
        %v1351 = vadd.f32 %v462, %v1346
        %v1352 = vsel %vm463, %v1351, 0.0
        %1353 = vadd.xlane.f32.xlu0 %v1352
        %v1354 = vpop.xlane.xlu0 %1353
        %v1355 = vmul.f32 %v1354, %v467
        %v1356 = vsub.f32 %v1351, %v1355
        %v1357 = vmul.f32 %v1356, %v1356
        %v1358 = vsel %vm463, %v1357, 0.0
        %1359 = vadd.xlane.f32.xlu0 %v1358
        %v1360 = vpop.xlane.xlu0 %1359
        %v1361 = vmul.f32 %v1360, %v467
        %v1362 = vadd.f32 %v1361, 1e-05
        %v1363 = vrsqrt.pop %v1362
        %v1364 = vmul.f32 %v1356, %v1363
        %v1365 = vlaneseq
        %v1366 = vshrl.u32 %v1365, 7
        %v1367 = vsub.s32 2, %v1366
        %v1368 = vrot.slane %v458, %v1367
        %v1369 = vmul.f32 %v1364, %v1368
        %v1370 = vlaneseq
        %v1371 = vshrl.u32 %v1370, 7
        %v1372 = vsub.s32 3, %v1371
        %v1373 = vrot.slane %v458, %v1372
        %v1374 = vadd.f32 %v1369, %v1373
        %v1375 = vld [vmem:[%s444] sm:$0xff]
        %v1376 = vld [vmem:[%s444 + $0x8] sm:$0xff]
        %v1377 = vld [vmem:[%s444 + $0x10] sm:$0xff]
        %v1378 = vld [vmem:[%s444 + $0x18] sm:$0xff]
        %v1379 = vld [vmem:[%s444 + $0x20] sm:$0xff]
        %v1380 = vld [vmem:[%s444 + $0x28] sm:$0xff]
        %v1381 = vpack.c.bf16 %v1374, %v1374
        %v1382 = vlaneseq
        %v1383 = vshrl.u32 %v1382, 7
        %v1384 = vsub.s32 6, %v1383
        %v1385 = vrot.slane %v458, %v1384
        %v1386 = vlaneseq
        %v1387 = vshrl.u32 %v1386, 7
        %v1388 = vsub.s32 6, %v1387
        %v1389 = vrot.slane %v459, %v1388
        %v1396 = vunpack.c.l.b16 %v1375
        %v1397 = vunpack.c.h.b16 %v1375
        %v1398 = vunpack.c.l.b16 %v1376
        %v1399 = vunpack.c.h.b16 %v1376
        %v1400 = vunpack.c.l.b16 %v1377
        %v1401 = vunpack.c.h.b16 %v1377
        %v1402 = vunpack.c.l.b16 %v1378
        %v1403 = vunpack.c.h.b16 %v1378
        %v1404 = vunpack.c.l.b16 %v1379
        %v1405 = vunpack.c.h.b16 %v1379
        %v1406 = vunpack.c.l.b16 %v1380
        %v1407 = vunpack.c.h.b16 %v1380
        %v1408 = vpack.c.b16 %v1398, %v1396
        %v1409 = vpack.c.b16 %v1399, %v1397
        %v1410 = vpack.c.b16 %v1402, %v1400
        %v1411 = vpack.c.b16 %v1403, %v1401
        %v1412 = vpack.c.b16 %v1406, %v1404
        %v1413 = vpack.c.b16 %v1407, %v1405
        %v1421 = vsel %vm463, %v1381, 0
        %1423 = vmatprep.subr.bf16.mxu0 0
        %1424 = vmatpush1.bf16.msra.mxu0 0
        %1425 = vmatprep.subr.bf16.mxu0 0
        %1426 = vmatpush1.bf16.msra.mxu0 0
        %1427 = vmatprep.subr.bf16.mxu0 0
        %1428 = vmatpush1.bf16.msra.mxu0 0
        %1429 = vmatprep.subr.bf16.mxu0 0
        %1430 = vmatpush1.bf16.msra.mxu0 0
        %1431 = vmatprep.subr.bf16.mxu0 0
        %1432 = vmatpush1.bf16.msra.mxu0 0
        %1433 = vmatprep.subr.bf16.mxu0 %v1413
        %1434 = vmatpush1.bf16.msra.mxu0 %v1412
        %1435 = vmatprep.subr.bf16.mxu0 %v1411
        %1436 = vmatpush1.bf16.msra.mxu0 %v1410
        %1437 = vmatprep.subr.bf16.mxu0 %v1409
        %1438 = vmatpush1.bf16.msra.mxu0 %v1408
        %1439 = vmatprep.subr.bf16.mxu0 0
        %1440 = vmatpush2.bf16.msra.mxu0 0
        %1441 = vmatprep.subr.bf16.mxu0 0
        %1442 = vmatpush2.bf16.msra.mxu0 0
        %1443 = vmatprep.subr.bf16.mxu0 0
        %1444 = vmatpush2.bf16.msra.mxu0 0
        %1445 = vmatprep.subr.bf16.mxu0 0
        %1446 = vmatpush2.bf16.msra.mxu0 0
        %1447 = vmatprep.subr.bf16.mxu0 0
        %1448 = vmatpush2.bf16.msra.mxu0 0
        %1449 = vmatprep.subr.bf16.mxu0 0
        %1450 = vmatpush2.bf16.msra.mxu0 0
        %1451 = vmatprep.subr.bf16.mxu0 0
        %1452 = vmatpush2.bf16.msra.mxu0 0
        %1453 = vmatprep.subr.bf16.mxu0 0
        %1454 = vmatpush2.bf16.msra.mxu0 0
        %1455 = vmatprep.mubr.bf16.mxu0 0
        %1456 = vmatmul.mubr.bf16.gmra.mxu0 %v1421
        %v1457 = vpop.f32.mrf.mxu0
        %v1458 = vadd.f32 %v1385, %v1457
        %v1459 = vpop.f32.mrf.mxu0
        %v1460 = vadd.f32 %v1389, %v1459
        %v1461 = vpop.f32.mrf.mxu0
        %v1462 = vpop.f32.mrf.mxu0
        %1463 = vdwg.mxu0
        %v1464 = vmul.f32 %v1458, 0.5
        %v1465 = vmul.f32 %v1460, 0.5
        %v1466 = vmul.f32 %v1458, 0.70710677
        %v1467 = vmul.f32 %v1460, 0.70710677
        %v1468 = verf.f32.pop %v1466
        %v1469 = verf.f32.pop %v1467
        %v1470 = vadd.f32 %v1468, 1.0
        %v1471 = vadd.f32 %v1469, 1.0
        %v1472 = vmul.f32 %v1464, %v1470
        %v1473 = vmul.f32 %v1465, %v1471
        %v1474 = vld [vmem:[%s449] sm:$0xf]
        %v1475 = vld [vmem:[%s449 + $0x4] sm:$0xf]
        %v1476 = vld [vmem:[%s449 + $0x8] sm:$0xf]
        %v1477 = vld [vmem:[%s449 + $0xc] sm:$0xf]
        %v1478 = vld [vmem:[%s449 + $0x10] sm:$0xf]
        %v1479 = vld [vmem:[%s449 + $0x14] sm:$0xf]
        %v1480 = vld [vmem:[%s449 + $0x18] sm:$0xf]
        %v1481 = vld [vmem:[%s449 + $0x1c] sm:$0xf]
        %v1482 = vld [vmem:[%s449 + $0x20] sm:$0xf]
        %v1483 = vld [vmem:[%s449 + $0x24] sm:$0xf]
        %v1484 = vld [vmem:[%s449 + $0x28] sm:$0xf]
        %v1485 = vld [vmem:[%s449 + $0x2c] sm:$0xf]
        %v1486 = vld [vmem:[%s449 + $0x30] sm:$0xf]
        %v1487 = vld [vmem:[%s449 + $0x34] sm:$0xf]
        %v1488 = vld [vmem:[%s449 + $0x38] sm:$0xf]
        %v1489 = vld [vmem:[%s449 + $0x3c] sm:$0xf]
        %v1490 = vld [vmem:[%s449 + $0x40] sm:$0xf]
        %v1491 = vld [vmem:[%s449 + $0x44] sm:$0xf]
        %v1492 = vld [vmem:[%s449 + $0x48] sm:$0xf]
        %v1493 = vld [vmem:[%s449 + $0x4c] sm:$0xf]
        %v1494 = vld [vmem:[%s449 + $0x50] sm:$0xf]
        %v1495 = vld [vmem:[%s449 + $0x54] sm:$0xf]
        %v1496 = vld [vmem:[%s449 + $0x58] sm:$0xf]
        %v1497 = vld [vmem:[%s449 + $0x5c] sm:$0xf]
        %v1498 = vpack.c.bf16 %v1472, %v1472
        %v1499 = vpack.c.bf16 %v1473, %v1473
        %v1500 = vlaneseq
        %v1501 = vshrl.u32 %v1500, 7
        %v1502 = vsub.s32 5, %v1501
        %v1503 = vrot.slane %v458, %v1502
        %v1528 = vunpack.c.l.b16 %v1474
        %v1529 = vunpack.c.l.b16 %v1475
        %v1530 = vunpack.c.l.b16 %v1476
        %v1531 = vunpack.c.l.b16 %v1477
        %v1532 = vunpack.c.l.b16 %v1478
        %v1533 = vunpack.c.l.b16 %v1479
        %v1534 = vunpack.c.l.b16 %v1480
        %v1535 = vunpack.c.l.b16 %v1481
        %v1536 = vunpack.c.l.b16 %v1482
        %v1537 = vunpack.c.l.b16 %v1483
        %v1538 = vunpack.c.l.b16 %v1484
        %v1539 = vunpack.c.l.b16 %v1485
        %v1540 = vunpack.c.l.b16 %v1486
        %v1541 = vunpack.c.l.b16 %v1487
        %v1542 = vunpack.c.l.b16 %v1488
        %v1543 = vunpack.c.l.b16 %v1489
        %v1544 = vunpack.c.l.b16 %v1490
        %v1545 = vunpack.c.l.b16 %v1491
        %v1546 = vunpack.c.l.b16 %v1492
        %v1547 = vunpack.c.l.b16 %v1493
        %v1548 = vunpack.c.l.b16 %v1494
        %v1549 = vunpack.c.l.b16 %v1495
        %v1550 = vunpack.c.l.b16 %v1496
        %v1551 = vunpack.c.l.b16 %v1497
        %v1552 = vpack.c.b16 %v1529, %v1528
        %v1553 = vpack.c.b16 %v1531, %v1530
        %v1554 = vpack.c.b16 %v1533, %v1532
        %v1555 = vpack.c.b16 %v1535, %v1534
        %v1556 = vpack.c.b16 %v1537, %v1536
        %v1557 = vpack.c.b16 %v1539, %v1538
        %v1558 = vpack.c.b16 %v1541, %v1540
        %v1559 = vpack.c.b16 %v1543, %v1542
        %v1560 = vpack.c.b16 %v1545, %v1544
        %v1561 = vpack.c.b16 %v1547, %v1546
        %v1562 = vpack.c.b16 %v1549, %v1548
        %v1563 = vpack.c.b16 %v1551, %v1550
        %vm1576 = vcmask 523264
        %v1578 = vsel %vm1576, %v1499, 0
        %1580 = vmatprep.subr.bf16.mxu0 0
        %1581 = vmatpush1.bf16.msra.mxu0 %v1559
        %1582 = vmatprep.subr.bf16.mxu0 0
        %1583 = vmatpush1.bf16.msra.mxu0 %v1558
        %1584 = vmatprep.subr.bf16.mxu0 0
        %1585 = vmatpush1.bf16.msra.mxu0 %v1557
        %1586 = vmatprep.subr.bf16.mxu0 0
        %1587 = vmatpush1.bf16.msra.mxu0 %v1556
        %1588 = vmatprep.subr.bf16.mxu0 0
        %1589 = vmatpush1.bf16.msra.mxu0 %v1555
        %1590 = vmatprep.subr.bf16.mxu0 0
        %1591 = vmatpush1.bf16.msra.mxu0 %v1554
        %1592 = vmatprep.subr.bf16.mxu0 0
        %1593 = vmatpush1.bf16.msra.mxu0 %v1553
        %1594 = vmatprep.subr.bf16.mxu0 0
        %1595 = vmatpush1.bf16.msra.mxu0 %v1552
        %1596 = vmatprep.subr.bf16.mxu0 0
        %1597 = vmatpush2.bf16.msra.mxu0 0
        %1598 = vmatprep.subr.bf16.mxu0 0
        %1599 = vmatpush2.bf16.msra.mxu0 0
        %1600 = vmatprep.subr.bf16.mxu0 0
        %1601 = vmatpush2.bf16.msra.mxu0 0
        %1602 = vmatprep.subr.bf16.mxu0 0
        %1603 = vmatpush2.bf16.msra.mxu0 0
        %1604 = vmatprep.subr.bf16.mxu0 0
        %1605 = vmatpush2.bf16.msra.mxu0 %v1563
        %1606 = vmatprep.subr.bf16.mxu0 0
        %1607 = vmatpush2.bf16.msra.mxu0 %v1562
        %1608 = vmatprep.subr.bf16.mxu0 0
        %1609 = vmatpush2.bf16.msra.mxu0 %v1561
        %1610 = vmatprep.subr.bf16.mxu0 0
        %1611 = vmatpush2.bf16.msra.mxu0 %v1560
        %1612 = vmatprep.mubr.bf16.mxu0 %v1578
        %1613 = vmatmul.mubr.bf16.gmra.mxu0 %v1498
        %v1614 = vpop.f32.mrf.mxu0
        %v1615 = vadd.f32 %v1503, %v1614
        %v1616 = vpop.f32.mrf.mxu0
        %v1617 = vpop.f32.mrf.mxu0
        %v1618 = vpop.f32.mrf.mxu0
        %1619 = vdwg.mxu0
        %v1620 = vadd.f32 %v1351, %v1615
        %1621 = vst.msk [vmem:[#allocation2] sm:$0xff] %vm463, %v1620
        %p1622 = scmp.eq.s32.totalorder %s30, 1
        // Predicated region
        $region61: #{tpu_custom_call.1} parent=51 // pred_check
          %p1623 = pneg %p1622
        $region62: #{tpu_custom_call.1} parent=51 // pred_check_branch
          %1625 = sbr.rel (%p1623) target = $region64
        $region63: #{tpu_custom_call.1} parent=51 // pred_region
          %v1626 = vld [vmem:[%s7] sm:$0x1]
          %v1627 = vld [vmem:[%s7 + $0x1] sm:$0x1]
          %v1628 = vsel %vm463, %v1620, 0.0
          %1629 = vadd.xlane.f32.xlu0 %v1628
          %v1630 = vpop.xlane.xlu0 %1629
          %v1631 = vmul.f32 %v1630, %v467
          %v1632 = vsub.f32 %v1620, %v1631
          %v1633 = vmul.f32 %v1632, %v1632
          %v1634 = vsel %vm463, %v1633, 0.0
          %1635 = vadd.xlane.f32.xlu0 %v1634
          %v1636 = vpop.xlane.xlu0 %1635
          %v1637 = vmul.f32 %v1636, %v467
          %v1638 = vadd.f32 %v1637, 1e-05
          %v1639 = vrsqrt.pop %v1638
          %v1640 = vmul.f32 %v1632, %v1639
          %v1641 = vlaneseq
          %v1642 = vshrl.u32 %v1641, 7
          %v1643 = vsub.s32 0, %v1642
          %v1644 = vrot.slane %v1626, %v1643
          %v1645 = vmul.f32 %v1640, %v1644
          %v1646 = vlaneseq
          %v1647 = vshrl.u32 %v1646, 7
          %v1648 = vsub.s32 0, %v1647
          %v1649 = vrot.slane %v1627, %v1648
          %v1650 = vadd.f32 %v1645, %v1649
          %1651 = vst.msk [vmem:[%s420] sm:$0xff] %vm463, %v1650
        $region64: #{tpu_custom_call.1} parent=51 // pred_fallthru
          _
        %s1652 = sand.u32 %s248, 1
        %s1653 = scalar_lea.sflag [#allocation6], %s1652
        %s1654 = sand.u32 %s248, 1
        %s1655 = smul.addr %s1654, 8
        %s1656 = scalar_lea.vmem [#allocation7], %s1655
        // Predicated region
        $region65: #{tpu_custom_call.1} parent=51 // pred_check
          %p1657 = pneg %p258
        $region66: #{tpu_custom_call.1} parent=51 // pred_check_branch
          %1659 = sbr.rel (%p1657) target = $region68
        $region67: #{tpu_custom_call.1} parent=51 // pred_region
          %s1661 = ssub.s32 128, 128
          %1662 = vsyncadd %s1653, %s1661
          %s1663 = smul.addr %s29, 128
          %s1664 = scalar_lea.hbm %s8, %s1663
          %s1666 = sshll.u32 %s1656, 4
          %s1667 = int_to_ptr.vmem [resolvable:$true] %s1666
          %1669 = dma.vmem_to_hbm [thread:$0]  %s1667, 128, %s1664, %s1653
        $region68: #{tpu_custom_call.1} parent=51 // pred_fallthru
          _
      $region52: #{tpu_custom_call.1} parent=5 // pred_fallthru
        _
      %p1670 = scmp.le.s32.totalorder 2, %s20
      // Predicated region
      $region69: #{tpu_custom_call.1} parent=5 // pred_check
        %p1671 = pneg %p1670
      $region70: #{tpu_custom_call.1} parent=5 // pred_check_branch
        %1673 = sbr.rel (%p1671) target = $region72
      $region71: #{tpu_custom_call.1} parent=5 // pred_region
        %s1674 = ssub.s32 %s20, 2
        // Predicated region
        $region73: #{tpu_custom_call.1} parent=71 // pred_check
          %p1675 = pneg %p264
        $region74: #{tpu_custom_call.1} parent=71 // pred_check_branch
          %1677 = sbr.rel (%p1675) target = $region76
        $region75: #{tpu_custom_call.1} parent=71 // pred_region
          %s1678 = sand.u32 %s249, 1
          %s1679 = scalar_lea.sflag [#allocation6], %s1678
          %s1680 = sand.u32 %s249, 1
          %s1681 = smul.addr %s1680, 8
          %s1682 = scalar_lea.vmem [#allocation7], %s1681
          %1683 = dma.done %s1679, 128
        $region76: #{tpu_custom_call.1} parent=71 // pred_fallthru
          _
      $region72: #{tpu_custom_call.1} parent=5 // pred_fallthru
        _
    $region6: #{tpu_custom_call.1} parent=1 // loop_footer
      %s24 = sadd.s32 1, %s20
    $region7: #{tpu_custom_call.1} parent=1 // loop_footer_branch
      %19 = sbr.rel target = $region3
    $region8: #{tpu_custom_call.1} parent=1 // loop_exit
      _
    %1684 = vsyncpa [#allocation5], 1
    %s1685 = scalar_lea.sflag [#allocation5], 1
    %1686 = vsyncpa %s1685, 1
    %1687 = vsyncpa [#allocation6], 1
    %s1688 = scalar_lea.sflag [#allocation6], 1
    %1689 = vsyncpa %s1688, 1

</llo_original>
